<compile_context>
chip_gen: v6e
topology: v6e:2x2x1
jax: 0.10.0
libtpu: 0.0.40
codegen_flags: <defaults>
</compile_context>

<pallas_src>
import functools

import jax
import jax.numpy as jnp
from jax import lax
from jax.experimental import pallas as pl
from jax.experimental.pallas import tpu as pltpu


# ---------------------------------------------------------------------------
# Fused kernel: LSTM over T steps + cat(action) + fc1/ReLU/fc2/ReLU/q
# ---------------------------------------------------------------------------
def _critic_kernel(state_ref, action_ref, wih_ref, whh_ref, bl_ref,
                   w1_ref, b1_ref, w2_ref, b2_ref, wq_ref, bq_ref,
                   q_ref, x_scr, *, B, T, Ta):
    """Fused critic forward.

    state_ref : (B*T, D)   row (b*T + t)            -- VMEM
    action_ref: (B*Ta, H)  row (b*Ta + a)           -- VMEM
    wih_ref   : (D, 4H)   whh_ref: (H, 4H)   bl_ref: (1, 4H)  (gate order i,f,g,o)
    w1_ref    : (H, F1)   b1_ref : (1, F1)
    w2_ref    : (F1, F2)  b2_ref : (1, F2)
    wq_ref    : (1, F2)   bq_ref : (1, 1)
    q_ref     : (B*S, 1)  row (b*S + s),  S = T + Ta
    x_scr     : (B*S, H)  VMEM scratch staging torch.cat([lstm_out, action], dim=1)
    """
    H = whh_ref.shape[0]
    S = T + Ta

    wih = wih_ref[...]            # hoisted weight loads
    whh = whh_ref[...]
    bl = bl_ref[...]

    h = jnp.zeros((B, H), jnp.float32)
    c = jnp.zeros((B, H), jnp.float32)

    # LSTM recurrence, fully unrolled (static T) == lax.fori_loop(..., unroll=True).
    for t in range(T):
        # Rows {b*T + t} for all b: one strided sublane slice, no transposes.
        x_t = state_ref[pl.ds(t, B, stride=T), :]                      # (B, D)
        gates = (jnp.dot(x_t, wih, preferred_element_type=jnp.float32)
                 + jnp.dot(h, whh, preferred_element_type=jnp.float32)
                 + bl)                                                 # (B, 4H)
        # Gate slices are intra-vreg lane extracts; the XLU slot is otherwise
        # idle at these shapes, so they are effectively free.
        i_g = jax.nn.sigmoid(gates[:, 0:H])
        f_g = jax.nn.sigmoid(gates[:, H:2 * H])
        g_g = jnp.tanh(gates[:, 2 * H:3 * H])
        o_g = jax.nn.sigmoid(gates[:, 3 * H:4 * H])
        c = f_g * c + i_g * g_g
        h = o_g * jnp.tanh(c)
        # Stage h_t at slab row (b*S + t).
        for b in range(B):
            x_scr[pl.ds(b * S + t, 1), :] = h[b:b + 1, :]

    # torch.cat([lstm_out, action], dim=1): action fills rows [b*S+T, b*S+S).
    for b in range(B):
        x_scr[pl.ds(b * S + T, Ta), :] = action_ref[pl.ds(b * Ta, Ta), :]

    # Fused MLP epilogue over all B*S rows at once.
    x = x_scr[...]                                                     # (B*S, H)
    h1 = jnp.maximum(
        jnp.dot(x, w1_ref[...], preferred_element_type=jnp.float32) + b1_ref[...],
        0.0)                                                           # (B*S, F1)
    h2 = jnp.maximum(
        jnp.dot(h1, w2_ref[...], preferred_element_type=jnp.float32) + b2_ref[...],
        0.0)                                                           # (B*S, F2)
    # q layer: single output column -> VPU multiply + XLU lane-sum (no MXU push).
    q_ref[...] = jnp.sum(h2 * wq_ref[...], axis=-1, keepdims=True) + bq_ref[...]


# ---------------------------------------------------------------------------
# CriticNetwork.forward (jitted wrapper around a single pallas_call)
# ---------------------------------------------------------------------------
@jax.jit
def critic_forward(prep, state, action):
    """state: (B, T, D) f32; action: (B, Ta, H) f32 -> q: (B, T+Ta, 1) f32."""
    B, T, D = state.shape
    _, Ta, H = action.shape
    S = T + Ta

    vmem = pl.BlockSpec(memory_space=pltpu.MemorySpace.VMEM)
    kernel = functools.partial(_critic_kernel, B=B, T=T, Ta=Ta)

    q_rows = pl.pallas_call(
        kernel,
        out_shape=jax.ShapeDtypeStruct((B * S, 1), jnp.float32),
        in_specs=[vmem] * 11,
        out_specs=vmem,
        scratch_shapes=[pltpu.VMEM((B * S, H), jnp.float32)],
    )(state.reshape(B * T, D),         # free row-major bitcast reshape
      action.reshape(B * Ta, H),       # free row-major bitcast reshape
      prep["wih_t"], prep["whh_t"], prep["b_lstm"],
      prep["w1_t"], prep["b1"], prep["w2_t"], prep["b2"],
      prep["wq_row"], prep["bq"])
    return q_rows.reshape(B, S, 1)


def prepare_params(p):
    """One-time PyTorch-layout -> kernel-layout conversion (pre-transposed
    weights, fused LSTM bias), so the jitted forward contains no transposes."""
    return {
        "wih_t": jnp.transpose(p["w_ih"]).astype(jnp.float32),           # (D, 4H)
        "whh_t": jnp.transpose(p["w_hh"]).astype(jnp.float32),           # (H, 4H)
        "b_lstm": (p["b_ih"] + p["b_hh"])[None, :].astype(jnp.float32),  # (1, 4H)
        "w1_t": jnp.transpose(p["w1"]).astype(jnp.float32),              # (H, F1)
        "b1": p["b1"][None, :].astype(jnp.float32),                      # (1, F1)
        "w2_t": jnp.transpose(p["w2"]).astype(jnp.float32),              # (F1, F2)
        "b2": p["b2"][None, :].astype(jnp.float32),                      # (1, F2)
        "wq_row": p["wq"].astype(jnp.float32),                           # (1, F2)
        "bq": p["bq"][None, :].astype(jnp.float32),                      # (1, 1)
    }


# ---------------------------------------------------------------------------
# Pure-JAX reference (for correctness check), PyTorch layout / semantics
# ---------------------------------------------------------------------------
def critic_reference(params, state, action):
    H = params["w_hh"].shape[1]
    B = state.shape[0]

    def step(carry, x_t):
        h, c = carry
        gates = (x_t @ params["w_ih"].T + params["b_ih"]
                 + h @ params["w_hh"].T + params["b_hh"])
        i = jax.nn.sigmoid(gates[:, 0:H])
        f = jax.nn.sigmoid(gates[:, H:2 * H])
        g = jnp.tanh(gates[:, 2 * H:3 * H])
        o = jax.nn.sigmoid(gates[:, 3 * H:4 * H])
        c = f * c + i * g
        h = o * jnp.tanh(c)
        return (h, c), h

    init = (jnp.zeros((B, H), jnp.float32), jnp.zeros((B, H), jnp.float32))
    _, hs = lax.scan(step, init, jnp.transpose(state, (1, 0, 2)))
    lstm_out = jnp.transpose(hs, (1, 0, 2))
    x = jnp.concatenate([lstm_out, action], axis=1)
    h1 = jax.nn.relu(x @ params["w1"].T + params["b1"])
    h2 = jax.nn.relu(h1 @ params["w2"].T + params["b2"])
    return h2 @ params["wq"].T + params["bq"]


# ---------------------------------------------------------------------------
# Deterministic parameter init (PyTorch-style uniform +/- 1/sqrt(fan_in))
# ---------------------------------------------------------------------------
def init_params(key, input_dims, n_agents, n_actions, H, fc1_dims, fc2_dims):
    D = input_dims + n_agents * n_actions
    ks = jax.random.split(key, 12)

    def u(k, shape, fan_in):
        bound = 1.0 / jnp.sqrt(fan_in)
        return jax.random.uniform(k, shape, jnp.float32, -bound, bound)

    return {
        "w_ih": u(ks[0], (4 * H, D), H),
        "w_hh": u(ks[1], (4 * H, H), H),
        "b_ih": u(ks[2], (4 * H,), H),
        "b_hh": u(ks[3], (4 * H,), H),
        "w1": u(ks[4], (fc1_dims, H), H),
        "b1": u(ks[5], (fc1_dims,), H),
        "w2": u(ks[6], (fc2_dims, fc1_dims), fc1_dims),
        "b2": u(ks[7], (fc2_dims,), fc1_dims),
        "wq": u(ks[8], (1, fc2_dims), fc2_dims),
        "bq": u(ks[9], (1,), fc2_dims),
    }
    # TODO(synk): optimizer / LR scheduler / checkpoint IO of the PyTorch module
    # are training/host-side utilities with no Pallas equivalent.


if __name__ == "__main__":
    # Small shapes consistent with the module.
    B, T, Ta = 2, 5, 3
    input_dims, n_agents, n_actions = 12, 3, 4
    H, fc1_dims, fc2_dims = 32, 64, 32
    D = input_dims + n_agents * n_actions            # 24

    key = jax.random.PRNGKey(0)
    kp, ks, ka = jax.random.split(key, 3)

    params = init_params(kp, input_dims, n_agents, n_actions, H, fc1_dims, fc2_dims)
    prep = prepare_params(params)                    # one-time layout conversion

    state = jax.random.normal(ks, (B, T, D), jnp.float32)
    # NOTE: the original torch forward cats `action` with lstm_out along dim=1,
    # which only type-checks when action's feature dim == lstm_hidden_size.
    action = jax.random.normal(ka, (B, Ta, H), jnp.float32)

    q = critic_forward(prep, state, action)
    q = jax.block_until_ready(q)

    q_ref = critic_reference(params, state, action)
    assert q.shape == (B, T + Ta, 1)
    max_err = float(jnp.max(jnp.abs(q - q_ref)))
    assert jnp.allclose(q, q_ref, atol=1e-4, rtol=1e-4), (
        f"mismatch vs reference: max abs err {max_err}")

    print("KERNEL_OK")
</pallas_src>

<mosaic_0001>
module attributes {stable_mosaic.version = 11 : i64} {
  func.func @_critic_kernel(%arg0: memref<10x24xf32, #tpu.memory_space<vmem>>, %arg1: memref<6x32xf32, #tpu.memory_space<vmem>>, %arg2: memref<24x128xf32, #tpu.memory_space<vmem>>, %arg3: memref<32x128xf32, #tpu.memory_space<vmem>>, %arg4: memref<1x128xf32, #tpu.memory_space<vmem>>, %arg5: memref<32x64xf32, #tpu.memory_space<vmem>>, %arg6: memref<1x64xf32, #tpu.memory_space<vmem>>, %arg7: memref<64x32xf32, #tpu.memory_space<vmem>>, %arg8: memref<1x32xf32, #tpu.memory_space<vmem>>, %arg9: memref<1x32xf32, #tpu.memory_space<vmem>>, %arg10: memref<1x1xf32, #tpu.memory_space<vmem>>, %arg11: memref<16x1xf32, #tpu.memory_space<vmem>>, %arg12: memref<16x32xf32, #tpu.memory_space<vmem>>) attributes {dimension_semantics = [], scalar_prefetch = 0 : i64, scratch_operands = 1 : i64, tpu.core_type = #tpu.core_type<tc>} {
    %c0 = arith.constant 0 : index
    %c0_0 = arith.constant 0 : index
    %0 = vector.load %arg2[%c0, %c0_0] : memref<24x128xf32, #tpu.memory_space<vmem>>, vector<24x128xf32>
    %c0_1 = arith.constant 0 : index
    %c0_2 = arith.constant 0 : index
    %1 = vector.load %arg3[%c0_1, %c0_2] : memref<32x128xf32, #tpu.memory_space<vmem>>, vector<32x128xf32>
    %c0_3 = arith.constant 0 : index
    %c0_4 = arith.constant 0 : index
    %2 = vector.load %arg4[%c0_3, %c0_4] : memref<1x128xf32, #tpu.memory_space<vmem>>, vector<1x128xf32>
    %cst = arith.constant 0.000000e+00 : f32
    %3 = vector.broadcast %cst : f32 to vector<2x32xf32>
    %cst_5 = arith.constant 0.000000e+00 : f32
    %4 = vector.broadcast %cst_5 : f32 to vector<2x32xf32>
    %c0_6 = arith.constant 0 : index
    %c0_7 = arith.constant 0 : index
    %5 = tpu.strided_load %arg0[%c0_6, %c0_7] {strides = array<i32: 5, 1>} : memref<10x24xf32, #tpu.memory_space<vmem>>, vector<2x24xf32>
    %cst_8 = arith.constant dense<0.000000e+00> : vector<2x128xf32>
    %6 = tpu.matmul %5, %0, %cst_8 {dimension_numbers = #tpu.dot_dimension_numbers<[1], [0], [0], [1], [0, 0, 1, 1], [], []>} : vector<2x24xf32>, vector<24x128xf32>, vector<2x128xf32> -> vector<2x128xf32>
    %cst_9 = arith.constant dense<0.000000e+00> : vector<2x128xf32>
    %7 = tpu.matmul %3, %1, %cst_9 {dimension_numbers = #tpu.dot_dimension_numbers<[1], [0], [0], [1], [0, 0, 1, 1], [], []>} : vector<2x32xf32>, vector<32x128xf32>, vector<2x128xf32> -> vector<2x128xf32>
    %8 = arith.addf %6, %7 : vector<2x128xf32>
    %9 = vector.broadcast %2 : vector<1x128xf32> to vector<2x128xf32>
    %10 = arith.addf %8, %9 : vector<2x128xf32>
    %11 = vector.extract_strided_slice %10 {offsets = [0, 0], sizes = [2, 32], strides = [1, 1]} : vector<2x128xf32> to vector<2x32xf32>
    %12 = arith.negf %11 : vector<2x32xf32>
    %13 = math.exp %12 : vector<2x32xf32>
    %cst_10 = arith.constant 1.000000e+00 : f32
    %14 = vector.broadcast %cst_10 : f32 to vector<2x32xf32>
    %15 = arith.addf %14, %13 : vector<2x32xf32>
    %16 = arith.divf %14, %15 : vector<2x32xf32>
    %17 = vector.extract_strided_slice %10 {offsets = [0, 32], sizes = [2, 32], strides = [1, 1]} : vector<2x128xf32> to vector<2x32xf32>
    %18 = arith.negf %17 : vector<2x32xf32>
    %19 = math.exp %18 : vector<2x32xf32>
    %cst_11 = arith.constant 1.000000e+00 : f32
    %20 = vector.broadcast %cst_11 : f32 to vector<2x32xf32>
    %21 = arith.addf %20, %19 : vector<2x32xf32>
    %22 = arith.divf %20, %21 : vector<2x32xf32>
    %23 = vector.extract_strided_slice %10 {offsets = [0, 64], sizes = [2, 32], strides = [1, 1]} : vector<2x128xf32> to vector<2x32xf32>
    %24 = math.tanh %23 : vector<2x32xf32>
    %25 = vector.extract_strided_slice %10 {offsets = [0, 96], sizes = [2, 32], strides = [1, 1]} : vector<2x128xf32> to vector<2x32xf32>
    %26 = arith.negf %25 : vector<2x32xf32>
    %27 = math.exp %26 : vector<2x32xf32>
    %cst_12 = arith.constant 1.000000e+00 : f32
    %28 = vector.broadcast %cst_12 : f32 to vector<2x32xf32>
    %29 = arith.addf %28, %27 : vector<2x32xf32>
    %30 = arith.divf %28, %29 : vector<2x32xf32>
    %31 = arith.mulf %22, %4 : vector<2x32xf32>
    %32 = arith.mulf %16, %24 : vector<2x32xf32>
    %33 = arith.addf %31, %32 : vector<2x32xf32>
    %34 = math.tanh %33 : vector<2x32xf32>
    %35 = arith.mulf %30, %34 : vector<2x32xf32>
    %36 = vector.extract_strided_slice %35 {offsets = [0, 0], sizes = [1, 32], strides = [1, 1]} : vector<2x32xf32> to vector<1x32xf32>
    %c0_13 = arith.constant 0 : index
    %c0_14 = arith.constant 0 : index
    %37 = vector.load %arg12[%c0_13, %c0_14] : memref<16x32xf32, #tpu.memory_space<vmem>>, vector<1x32xf32>
    tpu.vector_store %arg12[%c0_13, %c0_14], %36 {strides = array<i32>} : memref<16x32xf32, #tpu.memory_space<vmem>>, vector<1x32xf32>,
    %38 = vector.extract_strided_slice %35 {offsets = [1, 0], sizes = [1, 32], strides = [1, 1]} : vector<2x32xf32> to vector<1x32xf32>
    %c8 = arith.constant 8 : index
    %c0_15 = arith.constant 0 : index
    %39 = vector.load %arg12[%c8, %c0_15] : memref<16x32xf32, #tpu.memory_space<vmem>>, vector<1x32xf32>
    tpu.vector_store %arg12[%c8, %c0_15], %38 {strides = array<i32>} : memref<16x32xf32, #tpu.memory_space<vmem>>, vector<1x32xf32>,
    %c1 = arith.constant 1 : index
    %c0_16 = arith.constant 0 : index
    %40 = tpu.strided_load %arg0[%c1, %c0_16] {strides = array<i32: 5, 1>} : memref<10x24xf32, #tpu.memory_space<vmem>>, vector<2x24xf32>
    %cst_17 = arith.constant dense<0.000000e+00> : vector<2x128xf32>
    %41 = tpu.matmul %40, %0, %cst_17 {dimension_numbers = #tpu.dot_dimension_numbers<[1], [0], [0], [1], [0, 0, 1, 1], [], []>} : vector<2x24xf32>, vector<24x128xf32>, vector<2x128xf32> -> vector<2x128xf32>
    %cst_18 = arith.constant dense<0.000000e+00> : vector<2x128xf32>
    %42 = tpu.matmul %35, %1, %cst_18 {dimension_numbers = #tpu.dot_dimension_numbers<[1], [0], [0], [1], [0, 0, 1, 1], [], []>} : vector<2x32xf32>, vector<32x128xf32>, vector<2x128xf32> -> vector<2x128xf32>
    %43 = arith.addf %41, %42 : vector<2x128xf32>
    %44 = vector.broadcast %2 : vector<1x128xf32> to vector<2x128xf32>
    %45 = arith.addf %43, %44 : vector<2x128xf32>
    %46 = vector.extract_strided_slice %45 {offsets = [0, 0], sizes = [2, 32], strides = [1, 1]} : vector<2x128xf32> to vector<2x32xf32>
    %47 = arith.negf %46 : vector<2x32xf32>
    %48 = math.exp %47 : vector<2x32xf32>
    %cst_19 = arith.constant 1.000000e+00 : f32
    %49 = vector.broadcast %cst_19 : f32 to vector<2x32xf32>
    %50 = arith.addf %49, %48 : vector<2x32xf32>
    %51 = arith.divf %49, %50 : vector<2x32xf32>
    %52 = vector.extract_strided_slice %45 {offsets = [0, 32], sizes = [2, 32], strides = [1, 1]} : vector<2x128xf32> to vector<2x32xf32>
    %53 = arith.negf %52 : vector<2x32xf32>
    %54 = math.exp %53 : vector<2x32xf32>
    %cst_20 = arith.constant 1.000000e+00 : f32
    %55 = vector.broadcast %cst_20 : f32 to vector<2x32xf32>
    %56 = arith.addf %55, %54 : vector<2x32xf32>
    %57 = arith.divf %55, %56 : vector<2x32xf32>
    %58 = vector.extract_strided_slice %45 {offsets = [0, 64], sizes = [2, 32], strides = [1, 1]} : vector<2x128xf32> to vector<2x32xf32>
    %59 = math.tanh %58 : vector<2x32xf32>
    %60 = vector.extract_strided_slice %45 {offsets = [0, 96], sizes = [2, 32], strides = [1, 1]} : vector<2x128xf32> to vector<2x32xf32>
    %61 = arith.negf %60 : vector<2x32xf32>
    %62 = math.exp %61 : vector<2x32xf32>
    %cst_21 = arith.constant 1.000000e+00 : f32
    %63 = vector.broadcast %cst_21 : f32 to vector<2x32xf32>
    %64 = arith.addf %63, %62 : vector<2x32xf32>
    %65 = arith.divf %63, %64 : vector<2x32xf32>
    %66 = arith.mulf %57, %33 : vector<2x32xf32>
    %67 = arith.mulf %51, %59 : vector<2x32xf32>
    %68 = arith.addf %66, %67 : vector<2x32xf32>
    %69 = math.tanh %68 : vector<2x32xf32>
    %70 = arith.mulf %65, %69 : vector<2x32xf32>
    %71 = vector.extract_strided_slice %70 {offsets = [0, 0], sizes = [1, 32], strides = [1, 1]} : vector<2x32xf32> to vector<1x32xf32>
    %c1_22 = arith.constant 1 : index
    %c0_23 = arith.constant 0 : index
    %72 = vector.load %arg12[%c1_22, %c0_23] : memref<16x32xf32, #tpu.memory_space<vmem>>, vector<1x32xf32>
    tpu.vector_store %arg12[%c1_22, %c0_23], %71 {strides = array<i32>} : memref<16x32xf32, #tpu.memory_space<vmem>>, vector<1x32xf32>,
    %73 = vector.extract_strided_slice %70 {offsets = [1, 0], sizes = [1, 32], strides = [1, 1]} : vector<2x32xf32> to vector<1x32xf32>
    %c9 = arith.constant 9 : index
    %c0_24 = arith.constant 0 : index
    %74 = vector.load %arg12[%c9, %c0_24] : memref<16x32xf32, #tpu.memory_space<vmem>>, vector<1x32xf32>
    tpu.vector_store %arg12[%c9, %c0_24], %73 {strides = array<i32>} : memref<16x32xf32, #tpu.memory_space<vmem>>, vector<1x32xf32>,
    %c2 = arith.constant 2 : index
    %c0_25 = arith.constant 0 : index
    %75 = tpu.strided_load %arg0[%c2, %c0_25] {strides = array<i32: 5, 1>} : memref<10x24xf32, #tpu.memory_space<vmem>>, vector<2x24xf32>
    %cst_26 = arith.constant dense<0.000000e+00> : vector<2x128xf32>
    %76 = tpu.matmul %75, %0, %cst_26 {dimension_numbers = #tpu.dot_dimension_numbers<[1], [0], [0], [1], [0, 0, 1, 1], [], []>} : vector<2x24xf32>, vector<24x128xf32>, vector<2x128xf32> -> vector<2x128xf32>
    %cst_27 = arith.constant dense<0.000000e+00> : vector<2x128xf32>
    %77 = tpu.matmul %70, %1, %cst_27 {dimension_numbers = #tpu.dot_dimension_numbers<[1], [0], [0], [1], [0, 0, 1, 1], [], []>} : vector<2x32xf32>, vector<32x128xf32>, vector<2x128xf32> -> vector<2x128xf32>
    %78 = arith.addf %76, %77 : vector<2x128xf32>
    %79 = vector.broadcast %2 : vector<1x128xf32> to vector<2x128xf32>
    %80 = arith.addf %78, %79 : vector<2x128xf32>
    %81 = vector.extract_strided_slice %80 {offsets = [0, 0], sizes = [2, 32], strides = [1, 1]} : vector<2x128xf32> to vector<2x32xf32>
    %82 = arith.negf %81 : vector<2x32xf32>
    %83 = math.exp %82 : vector<2x32xf32>
    %cst_28 = arith.constant 1.000000e+00 : f32
    %84 = vector.broadcast %cst_28 : f32 to vector<2x32xf32>
    %85 = arith.addf %84, %83 : vector<2x32xf32>
    %86 = arith.divf %84, %85 : vector<2x32xf32>
    %87 = vector.extract_strided_slice %80 {offsets = [0, 32], sizes = [2, 32], strides = [1, 1]} : vector<2x128xf32> to vector<2x32xf32>
    %88 = arith.negf %87 : vector<2x32xf32>
    %89 = math.exp %88 : vector<2x32xf32>
    %cst_29 = arith.constant 1.000000e+00 : f32
    %90 = vector.broadcast %cst_29 : f32 to vector<2x32xf32>
    %91 = arith.addf %90, %89 : vector<2x32xf32>
    %92 = arith.divf %90, %91 : vector<2x32xf32>
    %93 = vector.extract_strided_slice %80 {offsets = [0, 64], sizes = [2, 32], strides = [1, 1]} : vector<2x128xf32> to vector<2x32xf32>
    %94 = math.tanh %93 : vector<2x32xf32>
    %95 = vector.extract_strided_slice %80 {offsets = [0, 96], sizes = [2, 32], strides = [1, 1]} : vector<2x128xf32> to vector<2x32xf32>
    %96 = arith.negf %95 : vector<2x32xf32>
    %97 = math.exp %96 : vector<2x32xf32>
    %cst_30 = arith.constant 1.000000e+00 : f32
    %98 = vector.broadcast %cst_30 : f32 to vector<2x32xf32>
    %99 = arith.addf %98, %97 : vector<2x32xf32>
    %100 = arith.divf %98, %99 : vector<2x32xf32>
    %101 = arith.mulf %92, %68 : vector<2x32xf32>
    %102 = arith.mulf %86, %94 : vector<2x32xf32>
    %103 = arith.addf %101, %102 : vector<2x32xf32>
    %104 = math.tanh %103 : vector<2x32xf32>
    %105 = arith.mulf %100, %104 : vector<2x32xf32>
    %106 = vector.extract_strided_slice %105 {offsets = [0, 0], sizes = [1, 32], strides = [1, 1]} : vector<2x32xf32> to vector<1x32xf32>
    %c2_31 = arith.constant 2 : index
    %c0_32 = arith.constant 0 : index
    %107 = vector.load %arg12[%c2_31, %c0_32] : memref<16x32xf32, #tpu.memory_space<vmem>>, vector<1x32xf32>
    tpu.vector_store %arg12[%c2_31, %c0_32], %106 {strides = array<i32>} : memref<16x32xf32, #tpu.memory_space<vmem>>, vector<1x32xf32>,
    %108 = vector.extract_strided_slice %105 {offsets = [1, 0], sizes = [1, 32], strides = [1, 1]} : vector<2x32xf32> to vector<1x32xf32>
    %c10 = arith.constant 10 : index
    %c0_33 = arith.constant 0 : index
    %109 = vector.load %arg12[%c10, %c0_33] : memref<16x32xf32, #tpu.memory_space<vmem>>, vector<1x32xf32>
    tpu.vector_store %arg12[%c10, %c0_33], %108 {strides = array<i32>} : memref<16x32xf32, #tpu.memory_space<vmem>>, vector<1x32xf32>,
    %c3 = arith.constant 3 : index
    %c0_34 = arith.constant 0 : index
    %110 = tpu.strided_load %arg0[%c3, %c0_34] {strides = array<i32: 5, 1>} : memref<10x24xf32, #tpu.memory_space<vmem>>, vector<2x24xf32>
    %cst_35 = arith.constant dense<0.000000e+00> : vector<2x128xf32>
    %111 = tpu.matmul %110, %0, %cst_35 {dimension_numbers = #tpu.dot_dimension_numbers<[1], [0], [0], [1], [0, 0, 1, 1], [], []>} : vector<2x24xf32>, vector<24x128xf32>, vector<2x128xf32> -> vector<2x128xf32>
    %cst_36 = arith.constant dense<0.000000e+00> : vector<2x128xf32>
    %112 = tpu.matmul %105, %1, %cst_36 {dimension_numbers = #tpu.dot_dimension_numbers<[1], [0], [0], [1], [0, 0, 1, 1], [], []>} : vector<2x32xf32>, vector<32x128xf32>, vector<2x128xf32> -> vector<2x128xf32>
    %113 = arith.addf %111, %112 : vector<2x128xf32>
    %114 = vector.broadcast %2 : vector<1x128xf32> to vector<2x128xf32>
    %115 = arith.addf %113, %114 : vector<2x128xf32>
    %116 = vector.extract_strided_slice %115 {offsets = [0, 0], sizes = [2, 32], strides = [1, 1]} : vector<2x128xf32> to vector<2x32xf32>
    %117 = arith.negf %116 : vector<2x32xf32>
    %118 = math.exp %117 : vector<2x32xf32>
    %cst_37 = arith.constant 1.000000e+00 : f32
    %119 = vector.broadcast %cst_37 : f32 to vector<2x32xf32>
    %120 = arith.addf %119, %118 : vector<2x32xf32>
    %121 = arith.divf %119, %120 : vector<2x32xf32>
    %122 = vector.extract_strided_slice %115 {offsets = [0, 32], sizes = [2, 32], strides = [1, 1]} : vector<2x128xf32> to vector<2x32xf32>
    %123 = arith.negf %122 : vector<2x32xf32>
    %124 = math.exp %123 : vector<2x32xf32>
    %cst_38 = arith.constant 1.000000e+00 : f32
    %125 = vector.broadcast %cst_38 : f32 to vector<2x32xf32>
    %126 = arith.addf %125, %124 : vector<2x32xf32>
    %127 = arith.divf %125, %126 : vector<2x32xf32>
    %128 = vector.extract_strided_slice %115 {offsets = [0, 64], sizes = [2, 32], strides = [1, 1]} : vector<2x128xf32> to vector<2x32xf32>
    %129 = math.tanh %128 : vector<2x32xf32>
    %130 = vector.extract_strided_slice %115 {offsets = [0, 96], sizes = [2, 32], strides = [1, 1]} : vector<2x128xf32> to vector<2x32xf32>
    %131 = arith.negf %130 : vector<2x32xf32>
    %132 = math.exp %131 : vector<2x32xf32>
    %cst_39 = arith.constant 1.000000e+00 : f32
    %133 = vector.broadcast %cst_39 : f32 to vector<2x32xf32>
    %134 = arith.addf %133, %132 : vector<2x32xf32>
    %135 = arith.divf %133, %134 : vector<2x32xf32>
    %136 = arith.mulf %127, %103 : vector<2x32xf32>
    %137 = arith.mulf %121, %129 : vector<2x32xf32>
    %138 = arith.addf %136, %137 : vector<2x32xf32>
    %139 = math.tanh %138 : vector<2x32xf32>
    %140 = arith.mulf %135, %139 : vector<2x32xf32>
    %141 = vector.extract_strided_slice %140 {offsets = [0, 0], sizes = [1, 32], strides = [1, 1]} : vector<2x32xf32> to vector<1x32xf32>
    %c3_40 = arith.constant 3 : index
    %c0_41 = arith.constant 0 : index
    %142 = vector.load %arg12[%c3_40, %c0_41] : memref<16x32xf32, #tpu.memory_space<vmem>>, vector<1x32xf32>
    tpu.vector_store %arg12[%c3_40, %c0_41], %141 {strides = array<i32>} : memref<16x32xf32, #tpu.memory_space<vmem>>, vector<1x32xf32>,
    %143 = vector.extract_strided_slice %140 {offsets = [1, 0], sizes = [1, 32], strides = [1, 1]} : vector<2x32xf32> to vector<1x32xf32>
    %c11 = arith.constant 11 : index
    %c0_42 = arith.constant 0 : index
    %144 = vector.load %arg12[%c11, %c0_42] : memref<16x32xf32, #tpu.memory_space<vmem>>, vector<1x32xf32>
    tpu.vector_store %arg12[%c11, %c0_42], %143 {strides = array<i32>} : memref<16x32xf32, #tpu.memory_space<vmem>>, vector<1x32xf32>,
    %c4 = arith.constant 4 : index
    %c0_43 = arith.constant 0 : index
    %145 = tpu.strided_load %arg0[%c4, %c0_43] {strides = array<i32: 5, 1>} : memref<10x24xf32, #tpu.memory_space<vmem>>, vector<2x24xf32>
    %cst_44 = arith.constant dense<0.000000e+00> : vector<2x128xf32>
    %146 = tpu.matmul %145, %0, %cst_44 {dimension_numbers = #tpu.dot_dimension_numbers<[1], [0], [0], [1], [0, 0, 1, 1], [], []>} : vector<2x24xf32>, vector<24x128xf32>, vector<2x128xf32> -> vector<2x128xf32>
    %cst_45 = arith.constant dense<0.000000e+00> : vector<2x128xf32>
    %147 = tpu.matmul %140, %1, %cst_45 {dimension_numbers = #tpu.dot_dimension_numbers<[1], [0], [0], [1], [0, 0, 1, 1], [], []>} : vector<2x32xf32>, vector<32x128xf32>, vector<2x128xf32> -> vector<2x128xf32>
    %148 = arith.addf %146, %147 : vector<2x128xf32>
    %149 = vector.broadcast %2 : vector<1x128xf32> to vector<2x128xf32>
    %150 = arith.addf %148, %149 : vector<2x128xf32>
    %151 = vector.extract_strided_slice %150 {offsets = [0, 0], sizes = [2, 32], strides = [1, 1]} : vector<2x128xf32> to vector<2x32xf32>
    %152 = arith.negf %151 : vector<2x32xf32>
    %153 = math.exp %152 : vector<2x32xf32>
    %cst_46 = arith.constant 1.000000e+00 : f32
    %154 = vector.broadcast %cst_46 : f32 to vector<2x32xf32>
    %155 = arith.addf %154, %153 : vector<2x32xf32>
    %156 = arith.divf %154, %155 : vector<2x32xf32>
    %157 = vector.extract_strided_slice %150 {offsets = [0, 32], sizes = [2, 32], strides = [1, 1]} : vector<2x128xf32> to vector<2x32xf32>
    %158 = arith.negf %157 : vector<2x32xf32>
    %159 = math.exp %158 : vector<2x32xf32>
    %cst_47 = arith.constant 1.000000e+00 : f32
    %160 = vector.broadcast %cst_47 : f32 to vector<2x32xf32>
    %161 = arith.addf %160, %159 : vector<2x32xf32>
    %162 = arith.divf %160, %161 : vector<2x32xf32>
    %163 = vector.extract_strided_slice %150 {offsets = [0, 64], sizes = [2, 32], strides = [1, 1]} : vector<2x128xf32> to vector<2x32xf32>
    %164 = math.tanh %163 : vector<2x32xf32>
    %165 = vector.extract_strided_slice %150 {offsets = [0, 96], sizes = [2, 32], strides = [1, 1]} : vector<2x128xf32> to vector<2x32xf32>
    %166 = arith.negf %165 : vector<2x32xf32>
    %167 = math.exp %166 : vector<2x32xf32>
    %cst_48 = arith.constant 1.000000e+00 : f32
    %168 = vector.broadcast %cst_48 : f32 to vector<2x32xf32>
    %169 = arith.addf %168, %167 : vector<2x32xf32>
    %170 = arith.divf %168, %169 : vector<2x32xf32>
    %171 = arith.mulf %162, %138 : vector<2x32xf32>
    %172 = arith.mulf %156, %164 : vector<2x32xf32>
    %173 = arith.addf %171, %172 : vector<2x32xf32>
    %174 = math.tanh %173 : vector<2x32xf32>
    %175 = arith.mulf %170, %174 : vector<2x32xf32>
    %176 = vector.extract_strided_slice %175 {offsets = [0, 0], sizes = [1, 32], strides = [1, 1]} : vector<2x32xf32> to vector<1x32xf32>
    %c4_49 = arith.constant 4 : index
    %c0_50 = arith.constant 0 : index
    %177 = vector.load %arg12[%c4_49, %c0_50] : memref<16x32xf32, #tpu.memory_space<vmem>>, vector<1x32xf32>
    tpu.vector_store %arg12[%c4_49, %c0_50], %176 {strides = array<i32>} : memref<16x32xf32, #tpu.memory_space<vmem>>, vector<1x32xf32>,
    %178 = vector.extract_strided_slice %175 {offsets = [1, 0], sizes = [1, 32], strides = [1, 1]} : vector<2x32xf32> to vector<1x32xf32>
    %c12 = arith.constant 12 : index
    %c0_51 = arith.constant 0 : index
    %179 = vector.load %arg12[%c12, %c0_51] : memref<16x32xf32, #tpu.memory_space<vmem>>, vector<1x32xf32>
    tpu.vector_store %arg12[%c12, %c0_51], %178 {strides = array<i32>} : memref<16x32xf32, #tpu.memory_space<vmem>>, vector<1x32xf32>,
    %c0_52 = arith.constant 0 : index
    %c0_53 = arith.constant 0 : index
    %180 = vector.load %arg1[%c0_52, %c0_53] : memref<6x32xf32, #tpu.memory_space<vmem>>, vector<3x32xf32>
    %c5 = arith.constant 5 : index
    %c0_54 = arith.constant 0 : index
    %181 = vector.load %arg12[%c5, %c0_54] : memref<16x32xf32, #tpu.memory_space<vmem>>, vector<3x32xf32>
    tpu.vector_store %arg12[%c5, %c0_54], %180 {strides = array<i32>} : memref<16x32xf32, #tpu.memory_space<vmem>>, vector<3x32xf32>,
    %c3_55 = arith.constant 3 : index
    %c0_56 = arith.constant 0 : index
    %182 = vector.load %arg1[%c3_55, %c0_56] : memref<6x32xf32, #tpu.memory_space<vmem>>, vector<3x32xf32>
    %c13 = arith.constant 13 : index
    %c0_57 = arith.constant 0 : index
    %183 = vector.load %arg12[%c13, %c0_57] : memref<16x32xf32, #tpu.memory_space<vmem>>, vector<3x32xf32>
    tpu.vector_store %arg12[%c13, %c0_57], %182 {strides = array<i32>} : memref<16x32xf32, #tpu.memory_space<vmem>>, vector<3x32xf32>,
    %c0_58 = arith.constant 0 : index
    %c0_59 = arith.constant 0 : index
    %184 = vector.load %arg12[%c0_58, %c0_59] : memref<16x32xf32, #tpu.memory_space<vmem>>, vector<16x32xf32>
    %c0_60 = arith.constant 0 : index
    %c0_61 = arith.constant 0 : index
    %185 = vector.load %arg5[%c0_60, %c0_61] : memref<32x64xf32, #tpu.memory_space<vmem>>, vector<32x64xf32>
    %cst_62 = arith.constant dense<0.000000e+00> : vector<16x64xf32>
    %186 = tpu.matmul %184, %185, %cst_62 {dimension_numbers = #tpu.dot_dimension_numbers<[1], [0], [0], [1], [0, 0, 1, 1], [], []>} : vector<16x32xf32>, vector<32x64xf32>, vector<16x64xf32> -> vector<16x64xf32>
    %c0_63 = arith.constant 0 : index
    %c0_64 = arith.constant 0 : index
    %187 = vector.load %arg6[%c0_63, %c0_64] : memref<1x64xf32, #tpu.memory_space<vmem>>, vector<1x64xf32>
    %188 = vector.broadcast %187 : vector<1x64xf32> to vector<16x64xf32>
    %189 = arith.addf %186, %188 : vector<16x64xf32>
    %cst_65 = arith.constant 0.000000e+00 : f32
    %190 = vector.broadcast %cst_65 : f32 to vector<16x64xf32>
    %191 = arith.maximumf %189, %190 : vector<16x64xf32>
    %c0_66 = arith.constant 0 : index
    %c0_67 = arith.constant 0 : index
    %192 = vector.load %arg7[%c0_66, %c0_67] : memref<64x32xf32, #tpu.memory_space<vmem>>, vector<64x32xf32>
    %cst_68 = arith.constant dense<0.000000e+00> : vector<16x32xf32>
    %193 = tpu.matmul %191, %192, %cst_68 {dimension_numbers = #tpu.dot_dimension_numbers<[1], [0], [0], [1], [0, 0, 1, 1], [], []>} : vector<16x64xf32>, vector<64x32xf32>, vector<16x32xf32> -> vector<16x32xf32>
    %c0_69 = arith.constant 0 : index
    %c0_70 = arith.constant 0 : index
    %194 = vector.load %arg8[%c0_69, %c0_70] : memref<1x32xf32, #tpu.memory_space<vmem>>, vector<1x32xf32>
    %195 = vector.broadcast %194 : vector<1x32xf32> to vector<16x32xf32>
    %196 = arith.addf %193, %195 : vector<16x32xf32>
    %cst_71 = arith.constant 0.000000e+00 : f32
    %197 = vector.broadcast %cst_71 : f32 to vector<16x32xf32>
    %198 = arith.maximumf %196, %197 : vector<16x32xf32>
    %c0_72 = arith.constant 0 : index
    %c0_73 = arith.constant 0 : index
    %199 = vector.load %arg9[%c0_72, %c0_73] : memref<1x32xf32, #tpu.memory_space<vmem>>, vector<1x32xf32>
    %200 = vector.broadcast %199 : vector<1x32xf32> to vector<16x32xf32>
    %201 = arith.mulf %198, %200 : vector<16x32xf32>
    %cst_74 = arith.constant dense<0.000000e+00> : vector<16xf32>
    %202 = vector.multi_reduction <add>, %201, %cst_74 [1] : vector<16x32xf32> to vector<16xf32>
    %203 = vector.shape_cast %202 : vector<16xf32> to vector<16x1xf32>
    %c0_75 = arith.constant 0 : index
    %c0_76 = arith.constant 0 : index
    %204 = vector.load %arg10[%c0_75, %c0_76] : memref<1x1xf32, #tpu.memory_space<vmem>>, vector<1x1xf32>
    %205 = vector.broadcast %204 : vector<1x1xf32> to vector<16x1xf32>
    %206 = arith.addf %203, %205 : vector<16x1xf32>
    %c0_77 = arith.constant 0 : index
    %c0_78 = arith.constant 0 : index
    %207 = vector.load %arg11[%c0_77, %c0_78] : memref<16x1xf32, #tpu.memory_space<vmem>>, vector<16x1xf32>
    tpu.vector_store %arg11[%c0_77, %c0_78], %206 {strides = array<i32>} : memref<16x1xf32, #tpu.memory_space<vmem>>, vector<16x1xf32>,
    return
  }
}

</mosaic_0001>

<llo_original>
// kernel: critic_forward.1
$region0: #{critic_forward.1}
  #allocation0 [shape = 'u32[]', space=smem, size = 0x4, offset = 0x4, fixed_abs, tag = 'smem constant byte address 0x4 - core index']
  #allocation1 [shape = 'u32[144,128]{1,0:T(1,128)}', space=vmem, size = 0x12000, scoped, tag = 'internal scratch']
  #allocation2 [shape = 'f32[16,32]{1,0:T(8,128)}', space=vmem, size = 0x2000, scoped, tag = 'scratch operand']
  #allocation3 [shape = 'f32[1,1]{1,0:T(1,128)S(1)}', space=vmem, size = 0x200, scoped, tag = 'scoped memory for critic_forward.1']
  %s0 = inlined_call_operand.vmem [shape: f32[10,24], index: 0, kind: input, shape index: {}]
  %s1 = inlined_call_operand.vmem [shape: f32[6,32], index: 1, kind: input, shape index: {}]
  %s2 = inlined_call_operand.vmem [shape: f32[24,128], index: 2, kind: input, shape index: {}]
  %s3 = inlined_call_operand.vmem [shape: f32[32,128], index: 3, kind: input, shape index: {}]
  %s4 = inlined_call_operand.vmem [shape: f32[1,128], index: 4, kind: input, shape index: {}]
  %s5 = inlined_call_operand.vmem [shape: f32[32,64], index: 5, kind: input, shape index: {}]
  %s6 = inlined_call_operand.vmem [shape: f32[1,64], index: 6, kind: input, shape index: {}]
  %s7 = inlined_call_operand.vmem [shape: f32[64,32], index: 7, kind: input, shape index: {}]
  %s8 = inlined_call_operand.vmem [shape: f32[1,32], index: 8, kind: input, shape index: {}]
  %s9 = inlined_call_operand.vmem [shape: f32[1,32], index: 9, kind: input, shape index: {}]
  %s10 = inlined_call_operand.<no memory space> [shape: f32[1,1], index: 10, kind: input, shape index: {}]
  %s11 = inlined_call_operand.vmem [shape: f32[16,1], index: 11, kind: output, shape index: {}]
  %s12 = sld [smem:[#allocation0]]
  $region54: #{critic_forward.1} parent=0
    _
  %s14 = ssub.s32 1, %s12
  %s15 = scalar_select 0, %s14, %s12
  %v16 = vstv %s10
  %17 = vst [vmem:[#allocation3] sm:$0x1] %v16
  // Predicated region
  $region2: #{critic_forward.1} parent=0 // pred_check
    _
  $region3: #{critic_forward.1} parent=0 // pred_check_branch
    %19 = sbr.rel (0) target = $region5
  $region4: #{critic_forward.1} parent=0 // pred_region
    _
  $region5: #{critic_forward.1} parent=0 // pred_fallthru
    _
  // Predicated region
  $region6: #{critic_forward.1} parent=0 // pred_check
    _
  $region7: #{critic_forward.1} parent=0 // pred_check_branch
    %21 = sbr.rel (0) target = $region9
  $region8: #{critic_forward.1} parent=0 // pred_region
    _
  $region9: #{critic_forward.1} parent=0 // pred_fallthru
    _
  // Predicated region
  $region10: #{critic_forward.1} parent=0 // pred_check
    _
  $region11: #{critic_forward.1} parent=0 // pred_check_branch
    %23 = sbr.rel (0) target = $region13
  $region12: #{critic_forward.1} parent=0 // pred_region
    _
  $region13: #{critic_forward.1} parent=0 // pred_fallthru
    _
  // Predicated region
  $region14: #{critic_forward.1} parent=0 // pred_check
    _
  $region15: #{critic_forward.1} parent=0 // pred_check_branch
    %25 = sbr.rel (0) target = $region17
  $region16: #{critic_forward.1} parent=0 // pred_region
    _
  $region17: #{critic_forward.1} parent=0 // pred_fallthru
    _
  // Predicated region
  $region18: #{critic_forward.1} parent=0 // pred_check
    _
  $region19: #{critic_forward.1} parent=0 // pred_check_branch
    %27 = sbr.rel (0) target = $region21
  $region20: #{critic_forward.1} parent=0 // pred_region
    _
  $region21: #{critic_forward.1} parent=0 // pred_fallthru
    _
  // Predicated region
  $region22: #{critic_forward.1} parent=0 // pred_check
    _
  $region23: #{critic_forward.1} parent=0 // pred_check_branch
    %29 = sbr.rel (0) target = $region25
  $region24: #{critic_forward.1} parent=0 // pred_region
    _
  $region25: #{critic_forward.1} parent=0 // pred_fallthru
    _
  // Predicated region
  $region26: #{critic_forward.1} parent=0 // pred_check
    _
  $region27: #{critic_forward.1} parent=0 // pred_check_branch
    %31 = sbr.rel (0) target = $region29
  $region28: #{critic_forward.1} parent=0 // pred_region
    _
  $region29: #{critic_forward.1} parent=0 // pred_fallthru
    _
  // Predicated region
  $region30: #{critic_forward.1} parent=0 // pred_check
    _
  $region31: #{critic_forward.1} parent=0 // pred_check_branch
    %33 = sbr.rel (0) target = $region33
  $region32: #{critic_forward.1} parent=0 // pred_region
    _
  $region33: #{critic_forward.1} parent=0 // pred_fallthru
    _
  // Predicated region
  $region34: #{critic_forward.1} parent=0 // pred_check
    _
  $region35: #{critic_forward.1} parent=0 // pred_check_branch
    %35 = sbr.rel (0) target = $region37
  $region36: #{critic_forward.1} parent=0 // pred_region
    _
  $region37: #{critic_forward.1} parent=0 // pred_fallthru
    _
  // Predicated region
  $region38: #{critic_forward.1} parent=0 // pred_check
    _
  $region39: #{critic_forward.1} parent=0 // pred_check_branch
    %37 = sbr.rel (0) target = $region41
  $region40: #{critic_forward.1} parent=0 // pred_region
    _
  $region41: #{critic_forward.1} parent=0 // pred_fallthru
    _
  // Predicated region
  $region42: #{critic_forward.1} parent=0 // pred_check
    _
  $region43: #{critic_forward.1} parent=0 // pred_check_branch
    %39 = sbr.rel (0) target = $region45
  $region44: #{critic_forward.1} parent=0 // pred_region
    _
  $region45: #{critic_forward.1} parent=0 // pred_fallthru
    _
  %v40 = vld [vmem:[%s2] sm:$0xff]
  %v41 = vld [vmem:[%s2 + $0x8] sm:$0xff]
  %v42 = vld [vmem:[%s2 + $0x10] sm:$0xff]
  %v43 = vld [vmem:[%s3] sm:$0xff]
  %v44 = vld [vmem:[%s3 + $0x8] sm:$0xff]
  %v45 = vld [vmem:[%s3 + $0x10] sm:$0xff]
  %v46 = vld [vmem:[%s3 + $0x18] sm:$0xff]
  %v47 = vld [vmem:[%s4] sm:$0x1]
  %v48 = vld [vmem:[%s0] ss:$5 sm:$0x3]
  %vm49 = vcmask 261120
  %v51 = vsel %vm49, 0.0, 0
  %53 = vmatprep.subr.mxu0 0.0
  %54 = vmatpush1.msra.mxu0 0.0
  %55 = vmatprep.subr.mxu0 0.0
  %56 = vmatpush1.msra.mxu0 0.0
  %57 = vmatprep.subr.mxu0 0.0
  %58 = vmatpush1.msra.mxu0 0.0
  %59 = vmatprep.subr.mxu0 0.0
  %60 = vmatpush1.msra.mxu0 0.0
  %61 = vmatprep.subr.mxu0 0.0
  %62 = vmatpush1.msra.mxu0 0.0
  %63 = vmatprep.subr.mxu0 0.0
  %64 = vmatpush1.msra.mxu0 0.0
  %65 = vmatprep.subr.mxu0 0.0
  %66 = vmatpush1.msra.mxu0 0.0
  %67 = vmatprep.subr.mxu0 0.0
  %68 = vmatpush1.msra.mxu0 0.0
  %69 = vmatprep.subr.mxu0 0.0
  %70 = vmatpush1.msra.mxu0 0.0
  %71 = vmatprep.subr.mxu0 0.0
  %72 = vmatpush1.msra.mxu0 0.0
  %73 = vmatprep.subr.mxu0 0.0
  %74 = vmatpush1.msra.mxu0 0.0
  %75 = vmatprep.subr.mxu0 0.0
  %76 = vmatpush1.msra.mxu0 0.0
  %77 = vmatprep.subr.mxu0 0.0
  %78 = vmatpush1.msra.mxu0 %v46
  %79 = vmatprep.subr.mxu0 0.0
  %80 = vmatpush1.msra.mxu0 %v45
  %81 = vmatprep.subr.mxu0 0.0
  %82 = vmatpush1.msra.mxu0 %v44
  %83 = vmatprep.subr.mxu0 0.0
  %84 = vmatpush1.msra.mxu0 %v43
  %85 = vmatprep.subr.mxu0 0.0
  %86 = vmatpush2.msra.mxu0 0.0
  %87 = vmatprep.subr.mxu0 0.0
  %88 = vmatpush2.msra.mxu0 0.0
  %89 = vmatprep.subr.mxu0 0.0
  %90 = vmatpush2.msra.mxu0 0.0
  %91 = vmatprep.subr.mxu0 0.0
  %92 = vmatpush2.msra.mxu0 0.0
  %93 = vmatprep.subr.mxu0 0.0
  %94 = vmatpush2.msra.mxu0 0.0
  %95 = vmatprep.subr.mxu0 0.0
  %96 = vmatpush2.msra.mxu0 0.0
  %97 = vmatprep.subr.mxu0 0.0
  %98 = vmatpush2.msra.mxu0 0.0
  %99 = vmatprep.subr.mxu0 0.0
  %100 = vmatpush2.msra.mxu0 0.0
  %101 = vmatprep.subr.mxu0 0.0
  %102 = vmatpush2.msra.mxu0 0.0
  %103 = vmatprep.subr.mxu0 0.0
  %104 = vmatpush2.msra.mxu0 0.0
  %105 = vmatprep.subr.mxu0 0.0
  %106 = vmatpush2.msra.mxu0 0.0
  %107 = vmatprep.subr.mxu0 0.0
  %108 = vmatpush2.msra.mxu0 0.0
  %109 = vmatprep.subr.mxu0 0.0
  %110 = vmatpush2.msra.mxu0 0.0
  %111 = vmatprep.subr.mxu0 0.0
  %112 = vmatpush2.msra.mxu0 0.0
  %113 = vmatprep.subr.mxu0 0.0
  %114 = vmatpush2.msra.mxu0 0.0
  %115 = vmatprep.subr.mxu0 0.0
  %116 = vmatpush2.msra.mxu0 0.0
  %117 = vmatprep.mubr.f32.mxu0 0.0
  %118 = vmatmul.mubr.f32.gmra.mxu0 %v51
  %v119 = vpop.f32.mrf.mxu0
  %v120 = vadd.f32 0.0, %v119
  %v121 = vpop.f32.mrf.mxu0
  %122 = vdwg.mxu0
  %vm123 = vcmask 195584
  %v125 = vsel %vm123, %v48, 0
  %127 = vmatprep.subr.mxu0 0.0
  %128 = vmatpush1.msra.mxu0 0.0
  %129 = vmatprep.subr.mxu0 0.0
  %130 = vmatpush1.msra.mxu0 0.0
  %131 = vmatprep.subr.mxu0 0.0
  %132 = vmatpush1.msra.mxu0 0.0
  %133 = vmatprep.subr.mxu0 0.0
  %134 = vmatpush1.msra.mxu0 0.0
  %135 = vmatprep.subr.mxu0 0.0
  %136 = vmatpush1.msra.mxu0 0.0
  %137 = vmatprep.subr.mxu0 0.0
  %138 = vmatpush1.msra.mxu0 0.0
  %139 = vmatprep.subr.mxu0 0.0
  %140 = vmatpush1.msra.mxu0 0.0
  %141 = vmatprep.subr.mxu0 0.0
  %142 = vmatpush1.msra.mxu0 0.0
  %143 = vmatprep.subr.mxu0 0.0
  %144 = vmatpush1.msra.mxu0 0.0
  %145 = vmatprep.subr.mxu0 0.0
  %146 = vmatpush1.msra.mxu0 0.0
  %147 = vmatprep.subr.mxu0 0.0
  %148 = vmatpush1.msra.mxu0 0.0
  %149 = vmatprep.subr.mxu0 0.0
  %150 = vmatpush1.msra.mxu0 0.0
  %151 = vmatprep.subr.mxu0 0.0
  %152 = vmatpush1.msra.mxu0 0.0
  %153 = vmatprep.subr.mxu0 0.0
  %154 = vmatpush1.msra.mxu0 %v42
  %155 = vmatprep.subr.mxu0 0.0
  %156 = vmatpush1.msra.mxu0 %v41
  %157 = vmatprep.subr.mxu0 0.0
  %158 = vmatpush1.msra.mxu0 %v40
  %159 = vmatprep.subr.mxu0 0.0
  %160 = vmatpush2.msra.mxu0 0.0
  %161 = vmatprep.subr.mxu0 0.0
  %162 = vmatpush2.msra.mxu0 0.0
  %163 = vmatprep.subr.mxu0 0.0
  %164 = vmatpush2.msra.mxu0 0.0
  %165 = vmatprep.subr.mxu0 0.0
  %166 = vmatpush2.msra.mxu0 0.0
  %167 = vmatprep.subr.mxu0 0.0
  %168 = vmatpush2.msra.mxu0 0.0
  %169 = vmatprep.subr.mxu0 0.0
  %170 = vmatpush2.msra.mxu0 0.0
  %171 = vmatprep.subr.mxu0 0.0
  %172 = vmatpush2.msra.mxu0 0.0
  %173 = vmatprep.subr.mxu0 0.0
  %174 = vmatpush2.msra.mxu0 0.0
  %175 = vmatprep.subr.mxu0 0.0
  %176 = vmatpush2.msra.mxu0 0.0
  %177 = vmatprep.subr.mxu0 0.0
  %178 = vmatpush2.msra.mxu0 0.0
  %179 = vmatprep.subr.mxu0 0.0
  %180 = vmatpush2.msra.mxu0 0.0
  %181 = vmatprep.subr.mxu0 0.0
  %182 = vmatpush2.msra.mxu0 0.0
  %183 = vmatprep.subr.mxu0 0.0
  %184 = vmatpush2.msra.mxu0 0.0
  %185 = vmatprep.subr.mxu0 0.0
  %186 = vmatpush2.msra.mxu0 0.0
  %187 = vmatprep.subr.mxu0 0.0
  %188 = vmatpush2.msra.mxu0 0.0
  %189 = vmatprep.subr.mxu0 0.0
  %190 = vmatpush2.msra.mxu0 0.0
  %191 = vmatprep.mubr.f32.mxu0 0.0
  %192 = vmatmul.mubr.f32.gmra.mxu0 %v125
  %v193 = vpop.f32.mrf.mxu0
  %v194 = vadd.f32 %v120, %v193
  %v195 = vpop.f32.mrf.mxu0
  %196 = vdwg.mxu0
  %v198 = vlaneseq
  %v199 = vshrl.u32 %v198, 7
  %v200 = vsub.s32 0, %v199
  %v201 = vrot.slane %v47, %v200
  %v203 = vadd.f32 %v194, %v201
  %v204 = vxor.u32 %v203, 2147483648
  %v205 = vmul.f32 %v204, 1.442695
  %v206 = vpow.pop %v205
  %v207 = vadd.f32 %v206, 1.0
  %v208 = vrcp.pop %v207
  %v209 = vmul.f32 1.0, %v208
  %v210 = vtanh.pop %v203
  %v211 = vmul.f32 %v209, 0.0
  %213 = vrot.lane.b32.xlu0 %v210, 64
  %v214 = vpop.permute.xlu0 %213
  %v216 = vmul.f32 %v209, %v214
  %218 = vrot.lane.b32.xlu0 %v216, 32
  %v219 = vpop.permute.xlu0 %218
  %v221 = vadd.f32 %v211, %v219
  %v222 = vtanh.pop %v221
  %224 = vrot.lane.b32.xlu0 %v222, 64
  %v225 = vpop.permute.xlu0 %224
  %v227 = vmul.f32 %v209, %v225
  %229 = vrot.lane.b32.xlu0 %v227, 32
  %v230 = vpop.permute.xlu0 %229
  %vm232 = vcmask 253952
  %233 = vst.msk [vmem:[#allocation2] sm:$0x1] %vm232, %v230
  %vm234 = vcmask 254977
  %235 = vst.msk [vmem:[#allocation2 + $0x7] sm:$0x2] %vm234, %v230
  %s236 = scalar_lea.vmem %s0, 1
  %v237 = vld [vmem:[%s236] ss:$5 sm:$0x3]
  %v238 = vsel %vm49, %v230, 0
  %240 = vmatprep.subr.mxu0 0.0
  %241 = vmatpush1.msra.mxu0 0.0
  %242 = vmatprep.subr.mxu0 0.0
  %243 = vmatpush1.msra.mxu0 0.0
  %244 = vmatprep.subr.mxu0 0.0
  %245 = vmatpush1.msra.mxu0 0.0
  %246 = vmatprep.subr.mxu0 0.0
  %247 = vmatpush1.msra.mxu0 0.0
  %248 = vmatprep.subr.mxu0 0.0
  %249 = vmatpush1.msra.mxu0 0.0
  %250 = vmatprep.subr.mxu0 0.0
  %251 = vmatpush1.msra.mxu0 0.0
  %252 = vmatprep.subr.mxu0 0.0
  %253 = vmatpush1.msra.mxu0 0.0
  %254 = vmatprep.subr.mxu0 0.0
  %255 = vmatpush1.msra.mxu0 0.0
  %256 = vmatprep.subr.mxu0 0.0
  %257 = vmatpush1.msra.mxu0 0.0
  %258 = vmatprep.subr.mxu0 0.0
  %259 = vmatpush1.msra.mxu0 0.0
  %260 = vmatprep.subr.mxu0 0.0
  %261 = vmatpush1.msra.mxu0 0.0
  %262 = vmatprep.subr.mxu0 0.0
  %263 = vmatpush1.msra.mxu0 0.0
  %264 = vmatprep.subr.mxu0 0.0
  %265 = vmatpush1.msra.mxu0 %v46
  %266 = vmatprep.subr.mxu0 0.0
  %267 = vmatpush1.msra.mxu0 %v45
  %268 = vmatprep.subr.mxu0 0.0
  %269 = vmatpush1.msra.mxu0 %v44
  %270 = vmatprep.subr.mxu0 0.0
  %271 = vmatpush1.msra.mxu0 %v43
  %272 = vmatprep.subr.mxu0 0.0
  %273 = vmatpush2.msra.mxu0 0.0
  %274 = vmatprep.subr.mxu0 0.0
  %275 = vmatpush2.msra.mxu0 0.0
  %276 = vmatprep.subr.mxu0 0.0
  %277 = vmatpush2.msra.mxu0 0.0
  %278 = vmatprep.subr.mxu0 0.0
  %279 = vmatpush2.msra.mxu0 0.0
  %280 = vmatprep.subr.mxu0 0.0
  %281 = vmatpush2.msra.mxu0 0.0
  %282 = vmatprep.subr.mxu0 0.0
  %283 = vmatpush2.msra.mxu0 0.0
  %284 = vmatprep.subr.mxu0 0.0
  %285 = vmatpush2.msra.mxu0 0.0
  %286 = vmatprep.subr.mxu0 0.0
  %287 = vmatpush2.msra.mxu0 0.0
  %288 = vmatprep.subr.mxu0 0.0
  %289 = vmatpush2.msra.mxu0 0.0
  %290 = vmatprep.subr.mxu0 0.0
  %291 = vmatpush2.msra.mxu0 0.0
  %292 = vmatprep.subr.mxu0 0.0
  %293 = vmatpush2.msra.mxu0 0.0
  %294 = vmatprep.subr.mxu0 0.0
  %295 = vmatpush2.msra.mxu0 0.0
  %296 = vmatprep.subr.mxu0 0.0
  %297 = vmatpush2.msra.mxu0 0.0
  %298 = vmatprep.subr.mxu0 0.0
  %299 = vmatpush2.msra.mxu0 0.0
  %300 = vmatprep.subr.mxu0 0.0
  %301 = vmatpush2.msra.mxu0 0.0
  %302 = vmatprep.subr.mxu0 0.0
  %303 = vmatpush2.msra.mxu0 0.0
  %304 = vmatprep.mubr.f32.mxu0 0.0
  %305 = vmatmul.mubr.f32.gmra.mxu0 %v238
  %v306 = vpop.f32.mrf.mxu0
  %v307 = vadd.f32 0.0, %v306
  %v308 = vpop.f32.mrf.mxu0
  %309 = vdwg.mxu0
  %v311 = vsel %vm123, %v237, 0
  %313 = vmatprep.subr.mxu0 0.0
  %314 = vmatpush1.msra.mxu0 0.0
  %315 = vmatprep.subr.mxu0 0.0
  %316 = vmatpush1.msra.mxu0 0.0
  %317 = vmatprep.subr.mxu0 0.0
  %318 = vmatpush1.msra.mxu0 0.0
  %319 = vmatprep.subr.mxu0 0.0
  %320 = vmatpush1.msra.mxu0 0.0
  %321 = vmatprep.subr.mxu0 0.0
  %322 = vmatpush1.msra.mxu0 0.0
  %323 = vmatprep.subr.mxu0 0.0
  %324 = vmatpush1.msra.mxu0 0.0
  %325 = vmatprep.subr.mxu0 0.0
  %326 = vmatpush1.msra.mxu0 0.0
  %327 = vmatprep.subr.mxu0 0.0
  %328 = vmatpush1.msra.mxu0 0.0
  %329 = vmatprep.subr.mxu0 0.0
  %330 = vmatpush1.msra.mxu0 0.0
  %331 = vmatprep.subr.mxu0 0.0
  %332 = vmatpush1.msra.mxu0 0.0
  %333 = vmatprep.subr.mxu0 0.0
  %334 = vmatpush1.msra.mxu0 0.0
  %335 = vmatprep.subr.mxu0 0.0
  %336 = vmatpush1.msra.mxu0 0.0
  %337 = vmatprep.subr.mxu0 0.0
  %338 = vmatpush1.msra.mxu0 0.0
  %339 = vmatprep.subr.mxu0 0.0
  %340 = vmatpush1.msra.mxu0 %v42
  %341 = vmatprep.subr.mxu0 0.0
  %342 = vmatpush1.msra.mxu0 %v41
  %343 = vmatprep.subr.mxu0 0.0
  %344 = vmatpush1.msra.mxu0 %v40
  %345 = vmatprep.subr.mxu0 0.0
  %346 = vmatpush2.msra.mxu0 0.0
  %347 = vmatprep.subr.mxu0 0.0
  %348 = vmatpush2.msra.mxu0 0.0
  %349 = vmatprep.subr.mxu0 0.0
  %350 = vmatpush2.msra.mxu0 0.0
  %351 = vmatprep.subr.mxu0 0.0
  %352 = vmatpush2.msra.mxu0 0.0
  %353 = vmatprep.subr.mxu0 0.0
  %354 = vmatpush2.msra.mxu0 0.0
  %355 = vmatprep.subr.mxu0 0.0
  %356 = vmatpush2.msra.mxu0 0.0
  %357 = vmatprep.subr.mxu0 0.0
  %358 = vmatpush2.msra.mxu0 0.0
  %359 = vmatprep.subr.mxu0 0.0
  %360 = vmatpush2.msra.mxu0 0.0
  %361 = vmatprep.subr.mxu0 0.0
  %362 = vmatpush2.msra.mxu0 0.0
  %363 = vmatprep.subr.mxu0 0.0
  %364 = vmatpush2.msra.mxu0 0.0
  %365 = vmatprep.subr.mxu0 0.0
  %366 = vmatpush2.msra.mxu0 0.0
  %367 = vmatprep.subr.mxu0 0.0
  %368 = vmatpush2.msra.mxu0 0.0
  %369 = vmatprep.subr.mxu0 0.0
  %370 = vmatpush2.msra.mxu0 0.0
  %371 = vmatprep.subr.mxu0 0.0
  %372 = vmatpush2.msra.mxu0 0.0
  %373 = vmatprep.subr.mxu0 0.0
  %374 = vmatpush2.msra.mxu0 0.0
  %375 = vmatprep.subr.mxu0 0.0
  %376 = vmatpush2.msra.mxu0 0.0
  %377 = vmatprep.mubr.f32.mxu0 0.0
  %378 = vmatmul.mubr.f32.gmra.mxu0 %v311
  %v379 = vpop.f32.mrf.mxu0
  %v380 = vadd.f32 %v307, %v379
  %v381 = vpop.f32.mrf.mxu0
  %382 = vdwg.mxu0
  %v383 = vadd.f32 %v380, %v201
  %v384 = vxor.u32 %v383, 2147483648
  %v385 = vmul.f32 %v384, 1.442695
  %v386 = vpow.pop %v385
  %v387 = vadd.f32 %v386, 1.0
  %v388 = vrcp.pop %v387
  %v389 = vmul.f32 1.0, %v388
  %v390 = vtanh.pop %v383
  %v391 = vmul.f32 %v389, %v221
  %393 = vrot.lane.b32.xlu0 %v390, 64
  %v394 = vpop.permute.xlu0 %393
  %v396 = vmul.f32 %v389, %v394
  %398 = vrot.lane.b32.xlu0 %v396, 32
  %v399 = vpop.permute.xlu0 %398
  %v401 = vadd.f32 %v391, %v399
  %v402 = vtanh.pop %v401
  %404 = vrot.lane.b32.xlu0 %v402, 64
  %v405 = vpop.permute.xlu0 %404
  %v407 = vmul.f32 %v389, %v405
  %409 = vrot.lane.b32.xlu0 %v407, 32
  %v410 = vpop.permute.xlu0 %409
  %412 = vst.msk [vmem:[#allocation2 + $0x1] sm:$0x1] %vm232, %v410
  %413 = vst.msk [vmem:[#allocation2 + $0x8] sm:$0x2] %vm234, %v410
  %s414 = scalar_lea.vmem %s0, 2
  %v415 = vld [vmem:[%s414] ss:$5 sm:$0x3]
  %v416 = vsel %vm49, %v410, 0
  %418 = vmatprep.subr.mxu0 0.0
  %419 = vmatpush1.msra.mxu0 0.0
  %420 = vmatprep.subr.mxu0 0.0
  %421 = vmatpush1.msra.mxu0 0.0
  %422 = vmatprep.subr.mxu0 0.0
  %423 = vmatpush1.msra.mxu0 0.0
  %424 = vmatprep.subr.mxu0 0.0
  %425 = vmatpush1.msra.mxu0 0.0
  %426 = vmatprep.subr.mxu0 0.0
  %427 = vmatpush1.msra.mxu0 0.0
  %428 = vmatprep.subr.mxu0 0.0
  %429 = vmatpush1.msra.mxu0 0.0
  %430 = vmatprep.subr.mxu0 0.0
  %431 = vmatpush1.msra.mxu0 0.0
  %432 = vmatprep.subr.mxu0 0.0
  %433 = vmatpush1.msra.mxu0 0.0
  %434 = vmatprep.subr.mxu0 0.0
  %435 = vmatpush1.msra.mxu0 0.0
  %436 = vmatprep.subr.mxu0 0.0
  %437 = vmatpush1.msra.mxu0 0.0
  %438 = vmatprep.subr.mxu0 0.0
  %439 = vmatpush1.msra.mxu0 0.0
  %440 = vmatprep.subr.mxu0 0.0
  %441 = vmatpush1.msra.mxu0 0.0
  %442 = vmatprep.subr.mxu0 0.0
  %443 = vmatpush1.msra.mxu0 %v46
  %444 = vmatprep.subr.mxu0 0.0
  %445 = vmatpush1.msra.mxu0 %v45
  %446 = vmatprep.subr.mxu0 0.0
  %447 = vmatpush1.msra.mxu0 %v44
  %448 = vmatprep.subr.mxu0 0.0
  %449 = vmatpush1.msra.mxu0 %v43
  %450 = vmatprep.subr.mxu0 0.0
  %451 = vmatpush2.msra.mxu0 0.0
  %452 = vmatprep.subr.mxu0 0.0
  %453 = vmatpush2.msra.mxu0 0.0
  %454 = vmatprep.subr.mxu0 0.0
  %455 = vmatpush2.msra.mxu0 0.0
  %456 = vmatprep.subr.mxu0 0.0
  %457 = vmatpush2.msra.mxu0 0.0
  %458 = vmatprep.subr.mxu0 0.0
  %459 = vmatpush2.msra.mxu0 0.0
  %460 = vmatprep.subr.mxu0 0.0
  %461 = vmatpush2.msra.mxu0 0.0
  %462 = vmatprep.subr.mxu0 0.0
  %463 = vmatpush2.msra.mxu0 0.0
  %464 = vmatprep.subr.mxu0 0.0
  %465 = vmatpush2.msra.mxu0 0.0
  %466 = vmatprep.subr.mxu0 0.0
  %467 = vmatpush2.msra.mxu0 0.0
  %468 = vmatprep.subr.mxu0 0.0
  %469 = vmatpush2.msra.mxu0 0.0
  %470 = vmatprep.subr.mxu0 0.0
  %471 = vmatpush2.msra.mxu0 0.0
  %472 = vmatprep.subr.mxu0 0.0
  %473 = vmatpush2.msra.mxu0 0.0
  %474 = vmatprep.subr.mxu0 0.0
  %475 = vmatpush2.msra.mxu0 0.0
  %476 = vmatprep.subr.mxu0 0.0
  %477 = vmatpush2.msra.mxu0 0.0
  %478 = vmatprep.subr.mxu0 0.0
  %479 = vmatpush2.msra.mxu0 0.0
  %480 = vmatprep.subr.mxu0 0.0
  %481 = vmatpush2.msra.mxu0 0.0
  %482 = vmatprep.mubr.f32.mxu0 0.0
  %483 = vmatmul.mubr.f32.gmra.mxu0 %v416
  %v484 = vpop.f32.mrf.mxu0
  %v485 = vadd.f32 0.0, %v484
  %v486 = vpop.f32.mrf.mxu0
  %487 = vdwg.mxu0
  %v489 = vsel %vm123, %v415, 0
  %491 = vmatprep.subr.mxu0 0.0
  %492 = vmatpush1.msra.mxu0 0.0
  %493 = vmatprep.subr.mxu0 0.0
  %494 = vmatpush1.msra.mxu0 0.0
  %495 = vmatprep.subr.mxu0 0.0
  %496 = vmatpush1.msra.mxu0 0.0
  %497 = vmatprep.subr.mxu0 0.0
  %498 = vmatpush1.msra.mxu0 0.0
  %499 = vmatprep.subr.mxu0 0.0
  %500 = vmatpush1.msra.mxu0 0.0
  %501 = vmatprep.subr.mxu0 0.0
  %502 = vmatpush1.msra.mxu0 0.0
  %503 = vmatprep.subr.mxu0 0.0
  %504 = vmatpush1.msra.mxu0 0.0
  %505 = vmatprep.subr.mxu0 0.0
  %506 = vmatpush1.msra.mxu0 0.0
  %507 = vmatprep.subr.mxu0 0.0
  %508 = vmatpush1.msra.mxu0 0.0
  %509 = vmatprep.subr.mxu0 0.0
  %510 = vmatpush1.msra.mxu0 0.0
  %511 = vmatprep.subr.mxu0 0.0
  %512 = vmatpush1.msra.mxu0 0.0
  %513 = vmatprep.subr.mxu0 0.0
  %514 = vmatpush1.msra.mxu0 0.0
  %515 = vmatprep.subr.mxu0 0.0
  %516 = vmatpush1.msra.mxu0 0.0
  %517 = vmatprep.subr.mxu0 0.0
  %518 = vmatpush1.msra.mxu0 %v42
  %519 = vmatprep.subr.mxu0 0.0
  %520 = vmatpush1.msra.mxu0 %v41
  %521 = vmatprep.subr.mxu0 0.0
  %522 = vmatpush1.msra.mxu0 %v40
  %523 = vmatprep.subr.mxu0 0.0
  %524 = vmatpush2.msra.mxu0 0.0
  %525 = vmatprep.subr.mxu0 0.0
  %526 = vmatpush2.msra.mxu0 0.0
  %527 = vmatprep.subr.mxu0 0.0
  %528 = vmatpush2.msra.mxu0 0.0
  %529 = vmatprep.subr.mxu0 0.0
  %530 = vmatpush2.msra.mxu0 0.0
  %531 = vmatprep.subr.mxu0 0.0
  %532 = vmatpush2.msra.mxu0 0.0
  %533 = vmatprep.subr.mxu0 0.0
  %534 = vmatpush2.msra.mxu0 0.0
  %535 = vmatprep.subr.mxu0 0.0
  %536 = vmatpush2.msra.mxu0 0.0
  %537 = vmatprep.subr.mxu0 0.0
  %538 = vmatpush2.msra.mxu0 0.0
  %539 = vmatprep.subr.mxu0 0.0
  %540 = vmatpush2.msra.mxu0 0.0
  %541 = vmatprep.subr.mxu0 0.0
  %542 = vmatpush2.msra.mxu0 0.0
  %543 = vmatprep.subr.mxu0 0.0
  %544 = vmatpush2.msra.mxu0 0.0
  %545 = vmatprep.subr.mxu0 0.0
  %546 = vmatpush2.msra.mxu0 0.0
  %547 = vmatprep.subr.mxu0 0.0
  %548 = vmatpush2.msra.mxu0 0.0
  %549 = vmatprep.subr.mxu0 0.0
  %550 = vmatpush2.msra.mxu0 0.0
  %551 = vmatprep.subr.mxu0 0.0
  %552 = vmatpush2.msra.mxu0 0.0
  %553 = vmatprep.subr.mxu0 0.0
  %554 = vmatpush2.msra.mxu0 0.0
  %555 = vmatprep.mubr.f32.mxu0 0.0
  %556 = vmatmul.mubr.f32.gmra.mxu0 %v489
  %v557 = vpop.f32.mrf.mxu0
  %v558 = vadd.f32 %v485, %v557
  %v559 = vpop.f32.mrf.mxu0
  %560 = vdwg.mxu0
  %v561 = vadd.f32 %v558, %v201
  %v562 = vxor.u32 %v561, 2147483648
  %v563 = vmul.f32 %v562, 1.442695
  %v564 = vpow.pop %v563
  %v565 = vadd.f32 %v564, 1.0
  %v566 = vrcp.pop %v565
  %v567 = vmul.f32 1.0, %v566
  %v568 = vtanh.pop %v561
  %v569 = vmul.f32 %v567, %v401
  %571 = vrot.lane.b32.xlu0 %v568, 64
  %v572 = vpop.permute.xlu0 %571
  %v574 = vmul.f32 %v567, %v572
  %576 = vrot.lane.b32.xlu0 %v574, 32
  %v577 = vpop.permute.xlu0 %576
  %v579 = vadd.f32 %v569, %v577
  %v580 = vtanh.pop %v579
  %582 = vrot.lane.b32.xlu0 %v580, 64
  %v583 = vpop.permute.xlu0 %582
  %v585 = vmul.f32 %v567, %v583
  %587 = vrot.lane.b32.xlu0 %v585, 32
  %v588 = vpop.permute.xlu0 %587
  %590 = vst.msk [vmem:[#allocation2 + $0x2] sm:$0x1] %vm232, %v588
  %591 = vst.msk [vmem:[#allocation2 + $0x9] sm:$0x2] %vm234, %v588
  %s592 = scalar_lea.vmem %s0, 3
  %v593 = vld [vmem:[%s592] ss:$5 sm:$0x3]
  %v594 = vsel %vm49, %v588, 0
  %596 = vmatprep.subr.mxu0 0.0
  %597 = vmatpush1.msra.mxu0 0.0
  %598 = vmatprep.subr.mxu0 0.0
  %599 = vmatpush1.msra.mxu0 0.0
  %600 = vmatprep.subr.mxu0 0.0
  %601 = vmatpush1.msra.mxu0 0.0
  %602 = vmatprep.subr.mxu0 0.0
  %603 = vmatpush1.msra.mxu0 0.0
  %604 = vmatprep.subr.mxu0 0.0
  %605 = vmatpush1.msra.mxu0 0.0
  %606 = vmatprep.subr.mxu0 0.0
  %607 = vmatpush1.msra.mxu0 0.0
  %608 = vmatprep.subr.mxu0 0.0
  %609 = vmatpush1.msra.mxu0 0.0
  %610 = vmatprep.subr.mxu0 0.0
  %611 = vmatpush1.msra.mxu0 0.0
  %612 = vmatprep.subr.mxu0 0.0
  %613 = vmatpush1.msra.mxu0 0.0
  %614 = vmatprep.subr.mxu0 0.0
  %615 = vmatpush1.msra.mxu0 0.0
  %616 = vmatprep.subr.mxu0 0.0
  %617 = vmatpush1.msra.mxu0 0.0
  %618 = vmatprep.subr.mxu0 0.0
  %619 = vmatpush1.msra.mxu0 0.0
  %620 = vmatprep.subr.mxu0 0.0
  %621 = vmatpush1.msra.mxu0 %v46
  %622 = vmatprep.subr.mxu0 0.0
  %623 = vmatpush1.msra.mxu0 %v45
  %624 = vmatprep.subr.mxu0 0.0
  %625 = vmatpush1.msra.mxu0 %v44
  %626 = vmatprep.subr.mxu0 0.0
  %627 = vmatpush1.msra.mxu0 %v43
  %628 = vmatprep.subr.mxu0 0.0
  %629 = vmatpush2.msra.mxu0 0.0
  %630 = vmatprep.subr.mxu0 0.0
  %631 = vmatpush2.msra.mxu0 0.0
  %632 = vmatprep.subr.mxu0 0.0
  %633 = vmatpush2.msra.mxu0 0.0
  %634 = vmatprep.subr.mxu0 0.0
  %635 = vmatpush2.msra.mxu0 0.0
  %636 = vmatprep.subr.mxu0 0.0
  %637 = vmatpush2.msra.mxu0 0.0
  %638 = vmatprep.subr.mxu0 0.0
  %639 = vmatpush2.msra.mxu0 0.0
  %640 = vmatprep.subr.mxu0 0.0
  %641 = vmatpush2.msra.mxu0 0.0
  %642 = vmatprep.subr.mxu0 0.0
  %643 = vmatpush2.msra.mxu0 0.0
  %644 = vmatprep.subr.mxu0 0.0
  %645 = vmatpush2.msra.mxu0 0.0
  %646 = vmatprep.subr.mxu0 0.0
  %647 = vmatpush2.msra.mxu0 0.0
  %648 = vmatprep.subr.mxu0 0.0
  %649 = vmatpush2.msra.mxu0 0.0
  %650 = vmatprep.subr.mxu0 0.0
  %651 = vmatpush2.msra.mxu0 0.0
  %652 = vmatprep.subr.mxu0 0.0
  %653 = vmatpush2.msra.mxu0 0.0
  %654 = vmatprep.subr.mxu0 0.0
  %655 = vmatpush2.msra.mxu0 0.0
  %656 = vmatprep.subr.mxu0 0.0
  %657 = vmatpush2.msra.mxu0 0.0
  %658 = vmatprep.subr.mxu0 0.0
  %659 = vmatpush2.msra.mxu0 0.0
  %660 = vmatprep.mubr.f32.mxu0 0.0
  %661 = vmatmul.mubr.f32.gmra.mxu0 %v594
  %v662 = vpop.f32.mrf.mxu0
  %v663 = vadd.f32 0.0, %v662
  %v664 = vpop.f32.mrf.mxu0
  %665 = vdwg.mxu0
  %v667 = vsel %vm123, %v593, 0
  %669 = vmatprep.subr.mxu0 0.0
  %670 = vmatpush1.msra.mxu0 0.0
  %671 = vmatprep.subr.mxu0 0.0
  %672 = vmatpush1.msra.mxu0 0.0
  %673 = vmatprep.subr.mxu0 0.0
  %674 = vmatpush1.msra.mxu0 0.0
  %675 = vmatprep.subr.mxu0 0.0
  %676 = vmatpush1.msra.mxu0 0.0
  %677 = vmatprep.subr.mxu0 0.0
  %678 = vmatpush1.msra.mxu0 0.0
  %679 = vmatprep.subr.mxu0 0.0
  %680 = vmatpush1.msra.mxu0 0.0
  %681 = vmatprep.subr.mxu0 0.0
  %682 = vmatpush1.msra.mxu0 0.0
  %683 = vmatprep.subr.mxu0 0.0
  %684 = vmatpush1.msra.mxu0 0.0
  %685 = vmatprep.subr.mxu0 0.0
  %686 = vmatpush1.msra.mxu0 0.0
  %687 = vmatprep.subr.mxu0 0.0
  %688 = vmatpush1.msra.mxu0 0.0
  %689 = vmatprep.subr.mxu0 0.0
  %690 = vmatpush1.msra.mxu0 0.0
  %691 = vmatprep.subr.mxu0 0.0
  %692 = vmatpush1.msra.mxu0 0.0
  %693 = vmatprep.subr.mxu0 0.0
  %694 = vmatpush1.msra.mxu0 0.0
  %695 = vmatprep.subr.mxu0 0.0
  %696 = vmatpush1.msra.mxu0 %v42
  %697 = vmatprep.subr.mxu0 0.0
  %698 = vmatpush1.msra.mxu0 %v41
  %699 = vmatprep.subr.mxu0 0.0
  %700 = vmatpush1.msra.mxu0 %v40
  %701 = vmatprep.subr.mxu0 0.0
  %702 = vmatpush2.msra.mxu0 0.0
  %703 = vmatprep.subr.mxu0 0.0
  %704 = vmatpush2.msra.mxu0 0.0
  %705 = vmatprep.subr.mxu0 0.0
  %706 = vmatpush2.msra.mxu0 0.0
  %707 = vmatprep.subr.mxu0 0.0
  %708 = vmatpush2.msra.mxu0 0.0
  %709 = vmatprep.subr.mxu0 0.0
  %710 = vmatpush2.msra.mxu0 0.0
  %711 = vmatprep.subr.mxu0 0.0
  %712 = vmatpush2.msra.mxu0 0.0
  %713 = vmatprep.subr.mxu0 0.0
  %714 = vmatpush2.msra.mxu0 0.0
  %715 = vmatprep.subr.mxu0 0.0
  %716 = vmatpush2.msra.mxu0 0.0
  %717 = vmatprep.subr.mxu0 0.0
  %718 = vmatpush2.msra.mxu0 0.0
  %719 = vmatprep.subr.mxu0 0.0
  %720 = vmatpush2.msra.mxu0 0.0
  %721 = vmatprep.subr.mxu0 0.0
  %722 = vmatpush2.msra.mxu0 0.0
  %723 = vmatprep.subr.mxu0 0.0
  %724 = vmatpush2.msra.mxu0 0.0
  %725 = vmatprep.subr.mxu0 0.0
  %726 = vmatpush2.msra.mxu0 0.0
  %727 = vmatprep.subr.mxu0 0.0
  %728 = vmatpush2.msra.mxu0 0.0
  %729 = vmatprep.subr.mxu0 0.0
  %730 = vmatpush2.msra.mxu0 0.0
  %731 = vmatprep.subr.mxu0 0.0
  %732 = vmatpush2.msra.mxu0 0.0
  %733 = vmatprep.mubr.f32.mxu0 0.0
  %734 = vmatmul.mubr.f32.gmra.mxu0 %v667
  %v735 = vpop.f32.mrf.mxu0
  %v736 = vadd.f32 %v663, %v735
  %v737 = vpop.f32.mrf.mxu0
  %738 = vdwg.mxu0
  %v739 = vadd.f32 %v736, %v201
  %v740 = vxor.u32 %v739, 2147483648
  %v741 = vmul.f32 %v740, 1.442695
  %v742 = vpow.pop %v741
  %v743 = vadd.f32 %v742, 1.0
  %v744 = vrcp.pop %v743
  %v745 = vmul.f32 1.0, %v744
  %v746 = vtanh.pop %v739
  %v747 = vmul.f32 %v745, %v579
  %749 = vrot.lane.b32.xlu0 %v746, 64
  %v750 = vpop.permute.xlu0 %749
  %v752 = vmul.f32 %v745, %v750
  %754 = vrot.lane.b32.xlu0 %v752, 32
  %v755 = vpop.permute.xlu0 %754
  %v757 = vadd.f32 %v747, %v755
  %v758 = vtanh.pop %v757
  %760 = vrot.lane.b32.xlu0 %v758, 64
  %v761 = vpop.permute.xlu0 %760
  %v763 = vmul.f32 %v745, %v761
  %765 = vrot.lane.b32.xlu0 %v763, 32
  %v766 = vpop.permute.xlu0 %765
  %768 = vst.msk [vmem:[#allocation2 + $0x3] sm:$0x1] %vm232, %v766
  %769 = vst.msk [vmem:[#allocation2 + $0xa] sm:$0x2] %vm234, %v766
  %s770 = scalar_lea.vmem %s0, 4
  %v771 = vld [vmem:[%s770] ss:$5 sm:$0x3]
  %v772 = vsel %vm49, %v766, 0
  %774 = vmatprep.subr.mxu0 0.0
  %775 = vmatpush1.msra.mxu0 0.0
  %776 = vmatprep.subr.mxu0 0.0
  %777 = vmatpush1.msra.mxu0 0.0
  %778 = vmatprep.subr.mxu0 0.0
  %779 = vmatpush1.msra.mxu0 0.0
  %780 = vmatprep.subr.mxu0 0.0
  %781 = vmatpush1.msra.mxu0 0.0
  %782 = vmatprep.subr.mxu0 0.0
  %783 = vmatpush1.msra.mxu0 0.0
  %784 = vmatprep.subr.mxu0 0.0
  %785 = vmatpush1.msra.mxu0 0.0
  %786 = vmatprep.subr.mxu0 0.0
  %787 = vmatpush1.msra.mxu0 0.0
  %788 = vmatprep.subr.mxu0 0.0
  %789 = vmatpush1.msra.mxu0 0.0
  %790 = vmatprep.subr.mxu0 0.0
  %791 = vmatpush1.msra.mxu0 0.0
  %792 = vmatprep.subr.mxu0 0.0
  %793 = vmatpush1.msra.mxu0 0.0
  %794 = vmatprep.subr.mxu0 0.0
  %795 = vmatpush1.msra.mxu0 0.0
  %796 = vmatprep.subr.mxu0 0.0
  %797 = vmatpush1.msra.mxu0 0.0
  %798 = vmatprep.subr.mxu0 0.0
  %799 = vmatpush1.msra.mxu0 %v46
  %800 = vmatprep.subr.mxu0 0.0
  %801 = vmatpush1.msra.mxu0 %v45
  %802 = vmatprep.subr.mxu0 0.0
  %803 = vmatpush1.msra.mxu0 %v44
  %804 = vmatprep.subr.mxu0 0.0
  %805 = vmatpush1.msra.mxu0 %v43
  %806 = vmatprep.subr.mxu0 0.0
  %807 = vmatpush2.msra.mxu0 0.0
  %808 = vmatprep.subr.mxu0 0.0
  %809 = vmatpush2.msra.mxu0 0.0
  %810 = vmatprep.subr.mxu0 0.0
  %811 = vmatpush2.msra.mxu0 0.0
  %812 = vmatprep.subr.mxu0 0.0
  %813 = vmatpush2.msra.mxu0 0.0
  %814 = vmatprep.subr.mxu0 0.0
  %815 = vmatpush2.msra.mxu0 0.0
  %816 = vmatprep.subr.mxu0 0.0
  %817 = vmatpush2.msra.mxu0 0.0
  %818 = vmatprep.subr.mxu0 0.0
  %819 = vmatpush2.msra.mxu0 0.0
  %820 = vmatprep.subr.mxu0 0.0
  %821 = vmatpush2.msra.mxu0 0.0
  %822 = vmatprep.subr.mxu0 0.0
  %823 = vmatpush2.msra.mxu0 0.0
  %824 = vmatprep.subr.mxu0 0.0
  %825 = vmatpush2.msra.mxu0 0.0
  %826 = vmatprep.subr.mxu0 0.0
  %827 = vmatpush2.msra.mxu0 0.0
  %828 = vmatprep.subr.mxu0 0.0
  %829 = vmatpush2.msra.mxu0 0.0
  %830 = vmatprep.subr.mxu0 0.0
  %831 = vmatpush2.msra.mxu0 0.0
  %832 = vmatprep.subr.mxu0 0.0
  %833 = vmatpush2.msra.mxu0 0.0
  %834 = vmatprep.subr.mxu0 0.0
  %835 = vmatpush2.msra.mxu0 0.0
  %836 = vmatprep.subr.mxu0 0.0
  %837 = vmatpush2.msra.mxu0 0.0
  %838 = vmatprep.mubr.f32.mxu0 0.0
  %839 = vmatmul.mubr.f32.gmra.mxu0 %v772
  %v840 = vpop.f32.mrf.mxu0
  %v841 = vadd.f32 0.0, %v840
  %v842 = vpop.f32.mrf.mxu0
  %843 = vdwg.mxu0
  %v845 = vsel %vm123, %v771, 0
  %847 = vmatprep.subr.mxu0 0.0
  %848 = vmatpush1.msra.mxu0 0.0
  %849 = vmatprep.subr.mxu0 0.0
  %850 = vmatpush1.msra.mxu0 0.0
  %851 = vmatprep.subr.mxu0 0.0
  %852 = vmatpush1.msra.mxu0 0.0
  %853 = vmatprep.subr.mxu0 0.0
  %854 = vmatpush1.msra.mxu0 0.0
  %855 = vmatprep.subr.mxu0 0.0
  %856 = vmatpush1.msra.mxu0 0.0
  %857 = vmatprep.subr.mxu0 0.0
  %858 = vmatpush1.msra.mxu0 0.0
  %859 = vmatprep.subr.mxu0 0.0
  %860 = vmatpush1.msra.mxu0 0.0
  %861 = vmatprep.subr.mxu0 0.0
  %862 = vmatpush1.msra.mxu0 0.0
  %863 = vmatprep.subr.mxu0 0.0
  %864 = vmatpush1.msra.mxu0 0.0
  %865 = vmatprep.subr.mxu0 0.0
  %866 = vmatpush1.msra.mxu0 0.0
  %867 = vmatprep.subr.mxu0 0.0
  %868 = vmatpush1.msra.mxu0 0.0
  %869 = vmatprep.subr.mxu0 0.0
  %870 = vmatpush1.msra.mxu0 0.0
  %871 = vmatprep.subr.mxu0 0.0
  %872 = vmatpush1.msra.mxu0 0.0
  %873 = vmatprep.subr.mxu0 0.0
  %874 = vmatpush1.msra.mxu0 %v42
  %875 = vmatprep.subr.mxu0 0.0
  %876 = vmatpush1.msra.mxu0 %v41
  %877 = vmatprep.subr.mxu0 0.0
  %878 = vmatpush1.msra.mxu0 %v40
  %879 = vmatprep.subr.mxu0 0.0
  %880 = vmatpush2.msra.mxu0 0.0
  %881 = vmatprep.subr.mxu0 0.0
  %882 = vmatpush2.msra.mxu0 0.0
  %883 = vmatprep.subr.mxu0 0.0
  %884 = vmatpush2.msra.mxu0 0.0
  %885 = vmatprep.subr.mxu0 0.0
  %886 = vmatpush2.msra.mxu0 0.0
  %887 = vmatprep.subr.mxu0 0.0
  %888 = vmatpush2.msra.mxu0 0.0
  %889 = vmatprep.subr.mxu0 0.0
  %890 = vmatpush2.msra.mxu0 0.0
  %891 = vmatprep.subr.mxu0 0.0
  %892 = vmatpush2.msra.mxu0 0.0
  %893 = vmatprep.subr.mxu0 0.0
  %894 = vmatpush2.msra.mxu0 0.0
  %895 = vmatprep.subr.mxu0 0.0
  %896 = vmatpush2.msra.mxu0 0.0
  %897 = vmatprep.subr.mxu0 0.0
  %898 = vmatpush2.msra.mxu0 0.0
  %899 = vmatprep.subr.mxu0 0.0
  %900 = vmatpush2.msra.mxu0 0.0
  %901 = vmatprep.subr.mxu0 0.0
  %902 = vmatpush2.msra.mxu0 0.0
  %903 = vmatprep.subr.mxu0 0.0
  %904 = vmatpush2.msra.mxu0 0.0
  %905 = vmatprep.subr.mxu0 0.0
  %906 = vmatpush2.msra.mxu0 0.0
  %907 = vmatprep.subr.mxu0 0.0
  %908 = vmatpush2.msra.mxu0 0.0
  %909 = vmatprep.subr.mxu0 0.0
  %910 = vmatpush2.msra.mxu0 0.0
  %911 = vmatprep.mubr.f32.mxu0 0.0
  %912 = vmatmul.mubr.f32.gmra.mxu0 %v845
  %v913 = vpop.f32.mrf.mxu0
  %v914 = vadd.f32 %v841, %v913
  %v915 = vpop.f32.mrf.mxu0
  %916 = vdwg.mxu0
  %v917 = vadd.f32 %v914, %v201
  %v918 = vxor.u32 %v917, 2147483648
  %v919 = vmul.f32 %v918, 1.442695
  %v920 = vpow.pop %v919
  %v921 = vadd.f32 %v920, 1.0
  %v922 = vrcp.pop %v921
  %v923 = vmul.f32 1.0, %v922
  %v924 = vtanh.pop %v917
  %v925 = vmul.f32 %v923, %v757
  %927 = vrot.lane.b32.xlu0 %v924, 64
  %v928 = vpop.permute.xlu0 %927
  %v930 = vmul.f32 %v923, %v928
  %932 = vrot.lane.b32.xlu0 %v930, 32
  %v933 = vpop.permute.xlu0 %932
  %v935 = vadd.f32 %v925, %v933
  %v936 = vtanh.pop %v935
  %938 = vrot.lane.b32.xlu0 %v936, 64
  %v939 = vpop.permute.xlu0 %938
  %v941 = vmul.f32 %v923, %v939
  %943 = vrot.lane.b32.xlu0 %v941, 32
  %v944 = vpop.permute.xlu0 %943
  %946 = vst.msk [vmem:[#allocation2 + $0x4] sm:$0x1] %vm232, %v944
  %947 = vst.msk [vmem:[#allocation2 + $0xb] sm:$0x2] %vm234, %v944
  %v948 = vld [vmem:[%s1] sm:$0x7]
  %vm949 = vcmask 256000
  %950 = vst.msk [vmem:[#allocation2 + $0x5] sm:$0x7] %vm949, %v948
  %v951 = vld [vmem:[%s1 + $0x3] sm:$0x7]
  %952 = vst.msk [vmem:[#allocation2 + $0xd] sm:$0x7] %vm949, %v951
  %v953 = vld [vmem:[#allocation2] sm:$0xff]
  %v954 = vld [vmem:[#allocation2 + $0x8] sm:$0xff]
  %v955 = vld [vmem:[%s5] sm:$0xff]
  %v956 = vld [vmem:[%s5 + $0x8] sm:$0xff]
  %v957 = vld [vmem:[%s5 + $0x10] sm:$0xff]
  %v958 = vld [vmem:[%s5 + $0x18] sm:$0xff]
  %v959 = vld [vmem:[%s6] sm:$0x1]
  %v961 = vlaneseq
  %v962 = vshrl.u32 %v961, 7
  %v963 = vsub.s32 0, %v962
  %v964 = vrot.slane %v959, %v963
  %v967 = vsel %vm49, %v953, 0
  %v970 = vsel %vm49, %v954, 0
  %972 = vmatprep.subr.mxu0 0.0
  %973 = vmatpush1.msra.mxu0 0.0
  %974 = vmatprep.subr.mxu0 0.0
  %975 = vmatpush1.msra.mxu0 0.0
  %976 = vmatprep.subr.mxu0 0.0
  %977 = vmatpush1.msra.mxu0 0.0
  %978 = vmatprep.subr.mxu0 0.0
  %979 = vmatpush1.msra.mxu0 0.0
  %980 = vmatprep.subr.mxu0 0.0
  %981 = vmatpush1.msra.mxu0 0.0
  %982 = vmatprep.subr.mxu0 0.0
  %983 = vmatpush1.msra.mxu0 0.0
  %984 = vmatprep.subr.mxu0 0.0
  %985 = vmatpush1.msra.mxu0 0.0
  %986 = vmatprep.subr.mxu0 0.0
  %987 = vmatpush1.msra.mxu0 0.0
  %988 = vmatprep.subr.mxu0 0.0
  %989 = vmatpush1.msra.mxu0 0.0
  %990 = vmatprep.subr.mxu0 0.0
  %991 = vmatpush1.msra.mxu0 0.0
  %992 = vmatprep.subr.mxu0 0.0
  %993 = vmatpush1.msra.mxu0 0.0
  %994 = vmatprep.subr.mxu0 0.0
  %995 = vmatpush1.msra.mxu0 0.0
  %996 = vmatprep.subr.mxu0 0.0
  %997 = vmatpush1.msra.mxu0 %v958
  %998 = vmatprep.subr.mxu0 0.0
  %999 = vmatpush1.msra.mxu0 %v957
  %1000 = vmatprep.subr.mxu0 0.0
  %1001 = vmatpush1.msra.mxu0 %v956
  %1002 = vmatprep.subr.mxu0 0.0
  %1003 = vmatpush1.msra.mxu0 %v955
  %1004 = vmatprep.subr.mxu0 0.0
  %1005 = vmatpush2.msra.mxu0 0.0
  %1006 = vmatprep.subr.mxu0 0.0
  %1007 = vmatpush2.msra.mxu0 0.0
  %1008 = vmatprep.subr.mxu0 0.0
  %1009 = vmatpush2.msra.mxu0 0.0
  %1010 = vmatprep.subr.mxu0 0.0
  %1011 = vmatpush2.msra.mxu0 0.0
  %1012 = vmatprep.subr.mxu0 0.0
  %1013 = vmatpush2.msra.mxu0 0.0
  %1014 = vmatprep.subr.mxu0 0.0
  %1015 = vmatpush2.msra.mxu0 0.0
  %1016 = vmatprep.subr.mxu0 0.0
  %1017 = vmatpush2.msra.mxu0 0.0
  %1018 = vmatprep.subr.mxu0 0.0
  %1019 = vmatpush2.msra.mxu0 0.0
  %1020 = vmatprep.subr.mxu0 0.0
  %1021 = vmatpush2.msra.mxu0 0.0
  %1022 = vmatprep.subr.mxu0 0.0
  %1023 = vmatpush2.msra.mxu0 0.0
  %1024 = vmatprep.subr.mxu0 0.0
  %1025 = vmatpush2.msra.mxu0 0.0
  %1026 = vmatprep.subr.mxu0 0.0
  %1027 = vmatpush2.msra.mxu0 0.0
  %1028 = vmatprep.subr.mxu0 0.0
  %1029 = vmatpush2.msra.mxu0 0.0
  %1030 = vmatprep.subr.mxu0 0.0
  %1031 = vmatpush2.msra.mxu0 0.0
  %1032 = vmatprep.subr.mxu0 0.0
  %1033 = vmatpush2.msra.mxu0 0.0
  %1034 = vmatprep.subr.mxu0 0.0
  %1035 = vmatpush2.msra.mxu0 0.0
  %1036 = vmatprep.mubr.f32.mxu0 0.0
  %1037 = vmatmul.mubr.f32.gmra.mxu0 %v967
  %v1038 = vpop.f32.mrf.mxu0
  %v1039 = vadd.f32 %v964, %v1038
  %v1040 = vpop.f32.mrf.mxu0
  %1041 = vmatprep.mubr.f32.mxu0 0.0
  %1042 = vmatmul.mubr.f32.gmra.mxu0 %v970
  %v1043 = vpop.f32.mrf.mxu0
  %v1044 = vadd.f32 %v964, %v1043
  %v1045 = vpop.f32.mrf.mxu0
  %1046 = vdwg.mxu0
  %v1047 = vmax.f32 %v1039, 0.0
  %v1048 = vmax.f32 %v1044, 0.0
  %v1049 = vld [vmem:[%s7] sm:$0xff]
  %v1050 = vld [vmem:[%s7 + $0x8] sm:$0xff]
  %v1051 = vld [vmem:[%s7 + $0x10] sm:$0xff]
  %v1052 = vld [vmem:[%s7 + $0x18] sm:$0xff]
  %v1053 = vld [vmem:[%s7 + $0x20] sm:$0xff]
  %v1054 = vld [vmem:[%s7 + $0x28] sm:$0xff]
  %v1055 = vld [vmem:[%s7 + $0x30] sm:$0xff]
  %v1056 = vld [vmem:[%s7 + $0x38] sm:$0xff]
  %v1057 = vld [vmem:[%s8] sm:$0x1]
  %v1059 = vlaneseq
  %v1060 = vshrl.u32 %v1059, 7
  %v1061 = vsub.s32 0, %v1060
  %v1062 = vrot.slane %v1057, %v1061
  %vm1064 = vcmask 523264
  %v1066 = vsel %vm1064, %v1047, 0
  %v1069 = vsel %vm1064, %v1048, 0
  %1071 = vmatprep.subr.mxu0 0.0
  %1072 = vmatpush1.msra.mxu0 0.0
  %1073 = vmatprep.subr.mxu0 0.0
  %1074 = vmatpush1.msra.mxu0 0.0
  %1075 = vmatprep.subr.mxu0 0.0
  %1076 = vmatpush1.msra.mxu0 0.0
  %1077 = vmatprep.subr.mxu0 0.0
  %1078 = vmatpush1.msra.mxu0 0.0
  %1079 = vmatprep.subr.mxu0 0.0
  %1080 = vmatpush1.msra.mxu0 0.0
  %1081 = vmatprep.subr.mxu0 0.0
  %1082 = vmatpush1.msra.mxu0 0.0
  %1083 = vmatprep.subr.mxu0 0.0
  %1084 = vmatpush1.msra.mxu0 0.0
  %1085 = vmatprep.subr.mxu0 0.0
  %1086 = vmatpush1.msra.mxu0 0.0
  %1087 = vmatprep.subr.mxu0 0.0
  %1088 = vmatpush1.msra.mxu0 %v1056
  %1089 = vmatprep.subr.mxu0 0.0
  %1090 = vmatpush1.msra.mxu0 %v1055
  %1091 = vmatprep.subr.mxu0 0.0
  %1092 = vmatpush1.msra.mxu0 %v1054
  %1093 = vmatprep.subr.mxu0 0.0
  %1094 = vmatpush1.msra.mxu0 %v1053
  %1095 = vmatprep.subr.mxu0 0.0
  %1096 = vmatpush1.msra.mxu0 %v1052
  %1097 = vmatprep.subr.mxu0 0.0
  %1098 = vmatpush1.msra.mxu0 %v1051
  %1099 = vmatprep.subr.mxu0 0.0
  %1100 = vmatpush1.msra.mxu0 %v1050
  %1101 = vmatprep.subr.mxu0 0.0
  %1102 = vmatpush1.msra.mxu0 %v1049
  %1103 = vmatprep.subr.mxu0 0.0
  %1104 = vmatpush2.msra.mxu0 0.0
  %1105 = vmatprep.subr.mxu0 0.0
  %1106 = vmatpush2.msra.mxu0 0.0
  %1107 = vmatprep.subr.mxu0 0.0
  %1108 = vmatpush2.msra.mxu0 0.0
  %1109 = vmatprep.subr.mxu0 0.0
  %1110 = vmatpush2.msra.mxu0 0.0
  %1111 = vmatprep.subr.mxu0 0.0
  %1112 = vmatpush2.msra.mxu0 0.0
  %1113 = vmatprep.subr.mxu0 0.0
  %1114 = vmatpush2.msra.mxu0 0.0
  %1115 = vmatprep.subr.mxu0 0.0
  %1116 = vmatpush2.msra.mxu0 0.0
  %1117 = vmatprep.subr.mxu0 0.0
  %1118 = vmatpush2.msra.mxu0 0.0
  %1119 = vmatprep.subr.mxu0 0.0
  %1120 = vmatpush2.msra.mxu0 0.0
  %1121 = vmatprep.subr.mxu0 0.0
  %1122 = vmatpush2.msra.mxu0 0.0
  %1123 = vmatprep.subr.mxu0 0.0
  %1124 = vmatpush2.msra.mxu0 0.0
  %1125 = vmatprep.subr.mxu0 0.0
  %1126 = vmatpush2.msra.mxu0 0.0
  %1127 = vmatprep.subr.mxu0 0.0
  %1128 = vmatpush2.msra.mxu0 0.0
  %1129 = vmatprep.subr.mxu0 0.0
  %1130 = vmatpush2.msra.mxu0 0.0
  %1131 = vmatprep.subr.mxu0 0.0
  %1132 = vmatpush2.msra.mxu0 0.0
  %1133 = vmatprep.subr.mxu0 0.0
  %1134 = vmatpush2.msra.mxu0 0.0
  %1135 = vmatprep.mubr.f32.mxu0 0.0
  %1136 = vmatmul.mubr.f32.gmra.mxu0 %v1066
  %v1137 = vpop.f32.mrf.mxu0
  %v1138 = vadd.f32 %v1062, %v1137
  %v1139 = vpop.f32.mrf.mxu0
  %1140 = vmatprep.mubr.f32.mxu0 0.0
  %1141 = vmatmul.mubr.f32.gmra.mxu0 %v1069
  %v1142 = vpop.f32.mrf.mxu0
  %v1143 = vadd.f32 %v1062, %v1142
  %v1144 = vpop.f32.mrf.mxu0
  %1145 = vdwg.mxu0
  %v1146 = vmax.f32 %v1138, 0.0
  %v1147 = vmax.f32 %v1143, 0.0
  %v1148 = vld [vmem:[%s9] sm:$0x1]
  %v1150 = vlaneseq
  %v1151 = vshrl.u32 %v1150, 7
  %v1152 = vsub.s32 0, %v1151
  %v1153 = vrot.slane %v1148, %v1152
  %v1155 = vmul.f32 %v1146, %v1153
  %v1156 = vmul.f32 %v1147, %v1153
  %v1157 = vsel %vm49, %v1155, 0.0
  %1158 = vadd.xlane.f32.xlu0 %v1157
  %v1159 = vpop.xlane.xlu0 %1158
  %v1160 = vsel %vm49, %v1156, 0.0
  %1161 = vadd.xlane.f32.xlu0 %v1160
  %v1162 = vpop.xlane.xlu0 %1161
  %v1163 = vld [vmem:[#allocation3] sm:$0x1]
  %v1165 = vlaneseq
  %v1166 = vshrl.u32 %v1165, 7
  %v1167 = vsub.s32 0, %v1166
  %v1168 = vrot.slane %v1163, %v1167
  %v1170 = vadd.f32 %v1159, %v1168
  %v1171 = vadd.f32 %v1162, %v1168
  %vm1172 = vcmask 7168
  %1173 = vst.msk [vmem:[%s11] sm:$0xff] %vm1172, %v1170
  %1174 = vst.msk [vmem:[%s11 + $0x8] sm:$0xff] %vm1172, %v1171
  // Predicated region
  $region46: #{critic_forward.1} parent=0 // pred_check
    _
  $region47: #{critic_forward.1} parent=0 // pred_check_branch
    %1176 = sbr.rel (0) target = $region49
  $region48: #{critic_forward.1} parent=0 // pred_region
    _
  $region49: #{critic_forward.1} parent=0 // pred_fallthru
    _
  // Predicated region
  $region50: #{critic_forward.1} parent=0 // pred_check
    _
  $region51: #{critic_forward.1} parent=0 // pred_check_branch
    %1178 = sbr.rel (0) target = $region53
  $region52: #{critic_forward.1} parent=0 // pred_region
    _
  $region53: #{critic_forward.1} parent=0 // pred_fallthru
    _

</llo_original>
